<compile_context>
chip_gen: v7x
topology: tpu7x:2x2x1
jax: 0.10.0
libtpu: 0.0.40
codegen_flags: <defaults>
</compile_context>

<pallas_src>
import math

import jax
import jax.numpy as jnp
from jax.experimental import pallas as pl
from jax.experimental.pallas import tpu as pltpu

# ----------------------------------------------------------------------------
# Module configuration (mirrors the torch config dicts)
# ----------------------------------------------------------------------------
NT = 6                  # n_trajs == config['n_trajectories']
SIZE = 32               # config['size'] (anchor / embedding width, MLP n_in == n_out)
N_BLOCKS = 2            # mcg_predictor n_blocks
DEC_H = 64              # NormalMLP hidden width: layers = [SIZE, DEC_H, 5*80 + 1]
T_OUT = 80              # trajectory length produced by the decoder
RES_DIM = 5 * T_OUT + 1        # 401 = 160 coords + 80 a + 80 b + 80 c + 1 proba
ALPHA = 0.5                    # running_mean_mode='sliding', alpha + beta == 1
BETA = 0.5
TRAINABLE_COV = True           # config['trainable_cov']

R = 8                   # padded rows per element in the carried CG state (6 s + 1 c + 1 dead)

# packed decoder-output layout (all regions start on a 128-lane boundary)
RES_PAD = 1024
COORD_OFF = 0           # [0, 160): coordinates, column = 2*t + d (already final layout)
PROB_OFF = 160          # [160, 161): probability logit (original column 400)
P_OFF = 256             # [256, 576): P region (see header comment)
Q_OFF = 640             # [640, 960): Q region
COORD_W = 2 * T_OUT     # 160
COV_W = 4 * T_OUT       # 320


# ----------------------------------------------------------------------------
# The fused kernel: state assembly + MCG predictor + decoder + layout-final heads
# ----------------------------------------------------------------------------
def _mcg_decoder_kernel(anchors_ref, emb_ref, scW1_ref, scB1_ref, scW2_ref, scB2_ref,
                        dW1_ref, dB1_ref, dW2_ref, dB2_ref,
                        coord_ref, cov_ref, prob_ref):
    bn = emb_ref.shape[0]                       # elements handled by this grid step

    # ---- assemble the CG state in VMEM: rows 0..NT-1 = anchors, NT = embedding, NT+1 = 0
    row = jax.lax.broadcasted_iota(jnp.int32, (bn, R, 1), 1)
    is_s = row < NT
    is_c = row == NT
    anchors_b = jnp.broadcast_to(anchors_ref[...][None], (bn, R, SIZE))
    emb_b = jnp.broadcast_to(emb_ref[...], (bn, R, SIZE))
    rsc = jnp.where(is_s, anchors_b, jnp.where(is_c, emb_b, 0.0))      # (bn, R, SIZE)

    flat_rows = bn * R
    is_s_flat = (jax.lax.broadcasted_iota(jnp.int32, (flat_rows, 1), 0) % R) < NT
    flat = rsc.reshape(flat_rows, SIZE)                                 # tile-aligned (R=8)

    # ---- MCGBlock: N_BLOCKS CGBlocks, statically unrolled; s/c MLPs fused along lanes
    for blk in range(N_BLOCKS):
        # fused layer 1: lanes [0:SIZE) = s_mlp path, [SIZE:2*SIZE) = c_mlp path
        h = jnp.dot(flat, scW1_ref[blk], preferred_element_type=jnp.float32) + scB1_ref[blk]
        h = jnp.maximum(h, 0.0)                                          # ReLU between layers
        x2 = jnp.where(is_s_flat, h[:, :SIZE], h[:, SIZE:])             # each row keeps its path
        o = jnp.dot(x2, scW2_ref[blk], preferred_element_type=jnp.float32) + scB2_ref[blk]
        o3 = o.reshape(bn, R, 2 * SIZE)
        s_out = o3[:, :, :SIZE]                  # valid on s rows (other rows masked below)
        c_out = o3[:, NT:NT + 1, SIZE:]          # (bn, 1, SIZE) c_mlp(running_mean_c)
        # CGBlock: s = s_mlp(s) * c_mlp(c); aggregated_c = max over the trajectory rows
        s_new = s_out * c_out
        agg_c = jnp.max(jnp.where(is_s, s_new, -jnp.inf), axis=1, keepdims=True)
        new_sc = jnp.where(is_s, s_new, jnp.where(is_c, agg_c, 0.0))    # dead row stays 0
        # running_mean_mode='sliding' (aggregate-then-mean, same as the reference)
        rsc = ALPHA * rsc + BETA * new_sc
        flat = rsc.reshape(flat_rows, SIZE)

    # ---- NormalMLP decoder on all R rows (rows NT..R-1 are dead filler; cheaper than gather)
    hd = jnp.maximum(
        jnp.dot(flat, dW1_ref[...], preferred_element_type=jnp.float32) + dB1_ref[...], 0.0)
    res = jnp.dot(hd, dW2_ref[...], preferred_element_type=jnp.float32) + dB2_ref[...]
    res3 = res.reshape(bn, R, RES_PAD)

    # ---- layout-final heads (only the NT valid rows are touched / written back)
    coord_ref[...] = res3[:, :NT, COORD_OFF:COORD_OFF + COORD_W]
    prob_ref[...] = res3[:, :NT, PROB_OFF:PROB_OFF + 1]

    lane = jax.lax.broadcasted_iota(jnp.int32, (1, 1, COV_W), 2) % 4
    inner = jnp.logical_or(lane == 1, lane == 2)         # off-diagonal cov entries
    if TRAINABLE_COV:
        p = res3[:, :NT, P_OFF:P_OFF + COV_W]
        q = res3[:, :NT, Q_OFF:Q_OFF + COV_W]
        sgn = jnp.where(inner, -0.5, 0.5)
        # lane 4t+0: exp(a)cosh(b)exp(c); 4t+1/2: sinh(b)exp(c); 4t+3: exp(-a)cosh(b)exp(c)
        cov_ref[...] = 0.5 * jnp.exp(p) + sgn * jnp.exp(q)
    else:
        cov_ref[...] = jnp.broadcast_to(jnp.where(inner, 0.0, 1.0), (bn, NT, COV_W))


# ----------------------------------------------------------------------------
# Wrapper: only free reshapes outside the kernel
# ----------------------------------------------------------------------------
def mcg_decoder_forward(final_embedding, params, *, block_n=128):
    B, A, size = final_embedding.shape
    assert size == SIZE
    N = B * A

    # batched grid: sweep block_n in 64-256 for large N; keep >= 2 steps for v7x's 2nd TC
    bn = max(1, min(block_n, N))
    if N > 1 and pl.cdiv(N, bn) < 2:
        bn = pl.cdiv(N, 2)
    grid_n = pl.cdiv(N, bn)

    emb = final_embedding.reshape(N, 1, SIZE)                         # free reshape
    anchors8 = jnp.zeros((R, SIZE), jnp.float32).at[:NT].set(params['anchors'])

    in_specs = [
        pl.BlockSpec((R, SIZE), lambda n: (0, 0)),                        # anchors (resident)
        pl.BlockSpec((bn, 1, SIZE), lambda n: (n, 0, 0)),                 # final_embedding
        pl.BlockSpec((N_BLOCKS, SIZE, 2 * SIZE), lambda n: (0, 0, 0)),    # fused CG W, layer 1
        pl.BlockSpec((N_BLOCKS, 1, 2 * SIZE), lambda n: (0, 0, 0)),       # fused CG b, layer 1
        pl.BlockSpec((N_BLOCKS, SIZE, 2 * SIZE), lambda n: (0, 0, 0)),    # fused CG W, layer 2
        pl.BlockSpec((N_BLOCKS, 1, 2 * SIZE), lambda n: (0, 0, 0)),       # fused CG b, layer 2
        pl.BlockSpec((SIZE, DEC_H), lambda n: (0, 0)),                    # decoder W1
        pl.BlockSpec((1, DEC_H), lambda n: (0, 0)),                       # decoder b1
        pl.BlockSpec((DEC_H, RES_PAD), lambda n: (0, 0)),                 # decoder W2 (packed)
        pl.BlockSpec((1, RES_PAD), lambda n: (0, 0)),                     # decoder b2 (packed)
    ]
    out_specs = (
        pl.BlockSpec((bn, NT, COORD_W), lambda n: (n, 0, 0)),
        pl.BlockSpec((bn, NT, COV_W), lambda n: (n, 0, 0)),
        pl.BlockSpec((bn, NT, 1), lambda n: (n, 0, 0)),
    )
    out_shape = (
        jax.ShapeDtypeStruct((N, NT, COORD_W), jnp.float32),
        jax.ShapeDtypeStruct((N, NT, COV_W), jnp.float32),
        jax.ShapeDtypeStruct((N, NT, 1), jnp.float32),
    )

    coords, cov, probas = pl.pallas_call(
        _mcg_decoder_kernel,
        out_shape=out_shape,
        grid=(grid_n,),
        in_specs=in_specs,
        out_specs=out_specs,
        compiler_params=pltpu.CompilerParams(
            dimension_semantics=("parallel",),
            vmem_limit_bytes=48 * 1024 * 1024),      # below v7x's 64 MiB physical ceiling
    )(anchors8, emb, params['scW1'], params['scB1'], params['scW2'], params['scB2'],
      params['dW1'], params['dB1'], params['dW2p'], params['dB2p'])

    # everything below is a free (metadata-only) reshape
    coordinates = coords.reshape(B, A, NT, T_OUT, 2)
    covariance_matrices = cov.reshape(B, A, NT, T_OUT, 2, 2)
    probas = probas.reshape(B, A, NT)
    return probas, coordinates, covariance_matrices


# ----------------------------------------------------------------------------
# Parameter initialization (matches torch nn.Linear / anchor init distributions)
# ----------------------------------------------------------------------------
def _linear(key, n_in, n_out):
    kw, kb = jax.random.split(key)
    bound = 1.0 / math.sqrt(n_in)
    w = jax.random.uniform(kw, (n_in, n_out), jnp.float32, -bound, bound)
    b = jax.random.uniform(kb, (n_out,), jnp.float32, -bound, bound)
    return w, b


def _interleave_cols(c0, c1, c2, c3):
    # output column 4t+k = ck[..., t]   (one-time, host/XLA-side parameter packing)
    stacked = jnp.stack([c0, c1, c2, c3], axis=-1)
    return stacked.reshape(*stacked.shape[:-2], stacked.shape[-2] * 4)


def init_params(key):
    ks = jax.random.split(key, 1 + 4 * N_BLOCKS + 2)
    stdv = 1.0 / math.sqrt(SIZE)
    anchors = jax.random.uniform(ks[0], (NT, SIZE), jnp.float32, -stdv, stdv)

    scW1, scB1, scW2, scB2 = [], [], [], []
    idx = 1
    for _ in range(N_BLOCKS):
        sw1, sb1 = _linear(ks[idx], SIZE, SIZE); idx += 1
        sw2, sb2 = _linear(ks[idx], SIZE, SIZE); idx += 1
        cw1, cb1 = _linear(ks[idx], SIZE, SIZE); idx += 1
        cw2, cb2 = _linear(ks[idx], SIZE, SIZE); idx += 1
        # fuse the s-path and c-path MLPs along the output (lane) axis
        scW1.append(jnp.concatenate([sw1, cw1], axis=1))
        scB1.append(jnp.concatenate([sb1, cb1])[None, :])
        scW2.append(jnp.concatenate([sw2, cw2], axis=1))
        scB2.append(jnp.concatenate([sb2, cb2])[None, :])

    dW1, dB1 = _linear(ks[idx], SIZE, DEC_H); idx += 1
    dW2, dB2 = _linear(ks[idx], DEC_H, RES_DIM)

    # re-pack the decoder head into the lane-aligned RES_PAD layout; the covariance
    # log-factors are pre-combined so the kernel only needs 2 exps + 1 fused select.
    w_a = dW2[:, 2 * T_OUT:3 * T_OUT]; b_a = dB2[2 * T_OUT:3 * T_OUT]
    w_b = dW2[:, 3 * T_OUT:4 * T_OUT]; b_b = dB2[3 * T_OUT:4 * T_OUT]
    w_c = dW2[:, 4 * T_OUT:5 * T_OUT]; b_c = dB2[4 * T_OUT:5 * T_OUT]

    dW2p = jnp.zeros((DEC_H, RES_PAD), jnp.float32)
    dB2p = jnp.zeros((RES_PAD,), jnp.float32)
    dW2p = dW2p.at[:, COORD_OFF:COORD_OFF + COORD_W].set(dW2[:, :COORD_W])
    dB2p = dB2p.at[COORD_OFF:COORD_OFF + COORD_W].set(dB2[:COORD_W])
    dW2p = dW2p.at[:, PROB_OFF].set(dW2[:, RES_DIM - 1])
    dB2p = dB2p.at[PROB_OFF].set(dB2[RES_DIM - 1])
    if TRAINABLE_COV:
        dW2p = dW2p.at[:, P_OFF:P_OFF + COV_W].set(
            _interleave_cols(w_a + w_b + w_c, w_b + w_c, w_b + w_c, -w_a + w_b + w_c))
        dB2p = dB2p.at[P_OFF:P_OFF + COV_W].set(
            _interleave_cols(b_a + b_b + b_c, b_b + b_c, b_b + b_c, -b_a + b_b + b_c))
        dW2p = dW2p.at[:, Q_OFF:Q_OFF + COV_W].set(
            _interleave_cols(w_a - w_b + w_c, -w_b + w_c, -w_b + w_c, -w_a - w_b + w_c))
        dB2p = dB2p.at[Q_OFF:Q_OFF + COV_W].set(
            _interleave_cols(b_a - b_b + b_c, -b_b + b_c, -b_b + b_c, -b_a - b_b + b_c))

    return dict(anchors=anchors,
                scW1=jnp.stack(scW1), scB1=jnp.stack(scB1),
                scW2=jnp.stack(scW2), scB2=jnp.stack(scB2),
                dW1=dW1, dB1=dB1[None, :], dW2p=dW2p, dB2p=dB2p[None, :],
                dW2=dW2, dB2=dB2)     # raw decoder head kept only for the pure-JAX reference


# ----------------------------------------------------------------------------
# Pure-JAX reference of the torch forward (for a semantics sanity check)
# ----------------------------------------------------------------------------
def _reference_forward(final_embedding, params):
    B, A, _ = final_embedding.shape
    rm_s = jnp.broadcast_to(params['anchors'][None, None], (B, A, NT, SIZE))
    rm_c = final_embedding[:, :, None, :]
    for blk in range(N_BLOCKS):
        W1 = params['scW1'][blk]; B1 = params['scB1'][blk][0]
        W2 = params['scW2'][blk]; B2 = params['scB2'][blk][0]
        s_out = jnp.maximum(rm_s @ W1[:, :SIZE] + B1[:SIZE], 0.0) @ W2[:, :SIZE] + B2[:SIZE]
        c_out = jnp.maximum(rm_c @ W1[:, SIZE:] + B1[SIZE:], 0.0) @ W2[:, SIZE:] + B2[SIZE:]
        s_new = s_out * c_out
        c_new = jnp.max(s_new, axis=-2, keepdims=True)
        rm_s = ALPHA * rm_s + BETA * s_new
        rm_c = ALPHA * rm_c + BETA * c_new
    hd = jnp.maximum(rm_s @ params['dW1'] + params['dB1'][0], 0.0)
    res = hd @ params['dW2'] + params['dB2']
    coords = res[..., :COORD_W].reshape(B, A, NT, T_OUT, 2)
    a = res[..., 2 * T_OUT:3 * T_OUT]
    b = res[..., 3 * T_OUT:4 * T_OUT]
    cc = res[..., 4 * T_OUT:5 * T_OUT]
    probas = res[..., -1]
    if TRAINABLE_COV:
        cov = (jnp.stack([jnp.exp(a) * jnp.cosh(b), jnp.sinh(b),
                          jnp.sinh(b), jnp.exp(-a) * jnp.cosh(b)], axis=-1)
               * jnp.exp(cc)[..., None])
    else:
        cov = jnp.stack([jnp.ones_like(a), jnp.zeros_like(a),
                         jnp.zeros_like(a), jnp.ones_like(a)], axis=-1)
    return probas, coords, cov.reshape(B, A, NT, T_OUT, 2, 2)


if __name__ == "__main__":
    key = jax.random.PRNGKey(0)
    kp, kx = jax.random.split(key)

    B, A = 2, 4                                   # final_embedding.shape[:2]
    params = init_params(kp)
    final_embedding = jax.random.normal(kx, (B, A, SIZE), dtype=jnp.float32)

    fwd = jax.jit(mcg_decoder_forward)
    probas, coordinates, covariance_matrices = fwd(final_embedding, params)
    jax.block_until_ready((probas, coordinates, covariance_matrices))

    assert probas.shape == (B, A, NT)
    assert coordinates.shape == (B, A, NT, T_OUT, 2)
    assert covariance_matrices.shape == (B, A, NT, T_OUT, 2, 2)

    # semantics check against the unfused pure-JAX reference
    ref_p, ref_coord, ref_cov = _reference_forward(final_embedding, params)
    assert jnp.allclose(probas, ref_p, rtol=1e-2, atol=1e-2)
    assert jnp.allclose(coordinates, ref_coord, rtol=1e-2, atol=1e-2)
    assert jnp.allclose(covariance_matrices, ref_cov, rtol=1e-2, atol=1e-2)

    print("KERNEL_OK")
</pallas_src>

<mosaic_0001>
module attributes {stable_mosaic.version = 11 : i64} {
  func.func @_mcg_decoder_kernel(%arg0: i32, %arg1: memref<8x32xf32, #tpu.memory_space<vmem>>, %arg2: memref<4x1x32xf32, #tpu.memory_space<vmem>>, %arg3: memref<2x32x64xf32, #tpu.memory_space<vmem>>, %arg4: memref<2x1x64xf32, #tpu.memory_space<vmem>>, %arg5: memref<2x32x64xf32, #tpu.memory_space<vmem>>, %arg6: memref<2x1x64xf32, #tpu.memory_space<vmem>>, %arg7: memref<32x64xf32, #tpu.memory_space<vmem>>, %arg8: memref<1x64xf32, #tpu.memory_space<vmem>>, %arg9: memref<64x1024xf32, #tpu.memory_space<vmem>>, %arg10: memref<1x1024xf32, #tpu.memory_space<vmem>>, %arg11: memref<4x6x160xf32, #tpu.memory_space<vmem>>, %arg12: memref<4x6x320xf32, #tpu.memory_space<vmem>>, %arg13: memref<4x6x1xf32, #tpu.memory_space<vmem>>) attributes {dimension_semantics = [#tpu.dimension_semantics<parallel>], iteration_bounds = array<i64: 2>, scalar_prefetch = 0 : i64, scratch_operands = 0 : i64, tpu.core_type = #tpu.core_type<tc>, window_params = [{pipeline_mode = #tpu.pipeline_mode<synchronous>, transform_indices = @transform_0, window_bounds = array<i64: 8, 32>}, {transform_indices = @transform_1, window_bounds = array<i64: 4, 1, 32>}, {pipeline_mode = #tpu.pipeline_mode<synchronous>, transform_indices = @transform_2, window_bounds = array<i64: 2, 32, 64>}, {pipeline_mode = #tpu.pipeline_mode<synchronous>, transform_indices = @transform_3, window_bounds = array<i64: 2, 1, 64>}, {pipeline_mode = #tpu.pipeline_mode<synchronous>, transform_indices = @transform_4, window_bounds = array<i64: 2, 32, 64>}, {pipeline_mode = #tpu.pipeline_mode<synchronous>, transform_indices = @transform_5, window_bounds = array<i64: 2, 1, 64>}, {pipeline_mode = #tpu.pipeline_mode<synchronous>, transform_indices = @transform_6, window_bounds = array<i64: 32, 64>}, {pipeline_mode = #tpu.pipeline_mode<synchronous>, transform_indices = @transform_7, window_bounds = array<i64: 1, 64>}, {pipeline_mode = #tpu.pipeline_mode<synchronous>, transform_indices = @transform_8, window_bounds = array<i64: 64, 1024>}, {pipeline_mode = #tpu.pipeline_mode<synchronous>, transform_indices = @transform_9, window_bounds = array<i64: 1, 1024>}, {transform_indices = @transform_10, window_bounds = array<i64: 4, 6, 160>}, {transform_indices = @transform_11, window_bounds = array<i64: 4, 6, 320>}, {transform_indices = @transform_12, window_bounds = array<i64: 4, 6, 1>}]} {
    %0 = tpu.iota {dimensions = array<i32: 1>} : vector<4x8x1xi32>
    %c6_i32 = arith.constant 6 : i32
    %1 = vector.broadcast %c6_i32 : i32 to vector<4x8x1xi32>
    %2 = arith.cmpi slt, %0, %1 : vector<4x8x1xi32>
    %c6_i32_0 = arith.constant 6 : i32
    %3 = vector.broadcast %c6_i32_0 : i32 to vector<4x8x1xi32>
    %4 = arith.cmpi eq, %0, %3 : vector<4x8x1xi32>
    %c0 = arith.constant 0 : index
    %c0_1 = arith.constant 0 : index
    %5 = vector.load %arg1[%c0, %c0_1] : memref<8x32xf32, #tpu.memory_space<vmem>>, vector<8x32xf32>
    %6 = vector.shape_cast %5 : vector<8x32xf32> to vector<1x8x32xf32>
    %7 = vector.shape_cast %6 : vector<1x8x32xf32> to vector<1x8x32xf32>
    %8 = vector.broadcast %7 : vector<1x8x32xf32> to vector<4x8x32xf32>
    %c0_2 = arith.constant 0 : index
    %c0_3 = arith.constant 0 : index
    %c0_4 = arith.constant 0 : index
    %9 = vector.load %arg2[%c0_2, %c0_3, %c0_4] : memref<4x1x32xf32, #tpu.memory_space<vmem>>, vector<4x1x32xf32>
    %10 = vector.shape_cast %9 : vector<4x1x32xf32> to vector<4x1x32xf32>
    %11 = vector.broadcast %10 : vector<4x1x32xf32> to vector<4x8x32xf32>
    %cst = arith.constant 0.000000e+00 : f32
    %12 = vector.shape_cast %4 : vector<4x8x1xi1> to vector<4x8x1xi1>
    %13 = vector.broadcast %12 : vector<4x8x1xi1> to vector<4x8x32xi1>
    %14 = vector.broadcast %cst : f32 to vector<4x8x32xf32>
    %15 = arith.select %13, %11, %14 : vector<4x8x32xi1>, vector<4x8x32xf32>
    %16 = vector.shape_cast %2 : vector<4x8x1xi1> to vector<4x8x1xi1>
    %17 = vector.broadcast %16 : vector<4x8x1xi1> to vector<4x8x32xi1>
    %18 = arith.select %17, %8, %15 : vector<4x8x32xi1>, vector<4x8x32xf32>
    %19 = tpu.iota {dimensions = array<i32: 0>} : vector<32x1xi32>
    %c8_i32 = arith.constant 8 : i32
    %c0_i32 = arith.constant 0 : i32
    %20 = arith.cmpi eq, %c8_i32, %c0_i32 : i32
    %c1_i32 = arith.constant 1 : i32
    %21 = arith.select %20, %c1_i32, %c8_i32 : i32
    %22 = vector.broadcast %21 : i32 to vector<32x1xi32>
    %23 = arith.remsi %19, %22 : vector<32x1xi32>
    %c0_i32_5 = arith.constant 0 : i32
    %24 = vector.broadcast %c0_i32_5 : i32 to vector<32x1xi32>
    %25 = arith.cmpi ne, %23, %24 : vector<32x1xi32>
    %c0_i32_6 = arith.constant 0 : i32
    %26 = vector.broadcast %c0_i32_6 : i32 to vector<32x1xi32>
    %27 = arith.cmpi slt, %23, %26 : vector<32x1xi32>
    %c0_i32_7 = arith.constant 0 : i32
    %28 = arith.cmpi slt, %21, %c0_i32_7 : i32
    %29 = vector.broadcast %28 : i1 to vector<32x1xi1>
    %30 = vector.broadcast %29 : vector<32x1xi1> to vector<32x1xi1>
    %31 = arith.xori %27, %30 : vector<32x1xi1>
    %32 = arith.andi %31, %25 : vector<32x1xi1>
    %33 = vector.broadcast %21 : i32 to vector<32x1xi32>
    %34 = arith.addi %23, %33 : vector<32x1xi32>
    %35 = arith.select %32, %34, %23 : vector<32x1xi1>, vector<32x1xi32>
    %c6_i32_8 = arith.constant 6 : i32
    %36 = vector.broadcast %c6_i32_8 : i32 to vector<32x1xi32>
    %37 = arith.cmpi slt, %35, %36 : vector<32x1xi32>
    %38 = vector.shape_cast %18 : vector<4x8x32xf32> to vector<32x32xf32>
    %c0_9 = arith.constant 0 : index
    %c0_10 = arith.constant 0 : index
    %c0_11 = arith.constant 0 : index
    %39 = vector.load %arg3[%c0_9, %c0_10, %c0_11] : memref<2x32x64xf32, #tpu.memory_space<vmem>>, vector<1x32x64xf32>
    %40 = vector.shape_cast %39 : vector<1x32x64xf32> to vector<32x64xf32>
    %cst_12 = arith.constant dense<0.000000e+00> : vector<32x64xf32>
    %41 = tpu.matmul %38, %40, %cst_12 {dimension_numbers = #tpu.dot_dimension_numbers<[1], [0], [0], [1], [0, 0, 1, 1], [], []>} : vector<32x32xf32>, vector<32x64xf32>, vector<32x64xf32> -> vector<32x64xf32>
    %c0_13 = arith.constant 0 : index
    %c0_14 = arith.constant 0 : index
    %c0_15 = arith.constant 0 : index
    %42 = vector.load %arg4[%c0_13, %c0_14, %c0_15] : memref<2x1x64xf32, #tpu.memory_space<vmem>>, vector<1x1x64xf32>
    %43 = vector.shape_cast %42 : vector<1x1x64xf32> to vector<1x64xf32>
    %44 = vector.broadcast %43 : vector<1x64xf32> to vector<32x64xf32>
    %45 = arith.addf %41, %44 : vector<32x64xf32>
    %cst_16 = arith.constant 0.000000e+00 : f32
    %46 = vector.broadcast %cst_16 : f32 to vector<32x64xf32>
    %47 = arith.maximumf %45, %46 : vector<32x64xf32>
    %48 = vector.extract_strided_slice %47 {offsets = [0, 0], sizes = [32, 32], strides = [1, 1]} : vector<32x64xf32> to vector<32x32xf32>
    %49 = vector.extract_strided_slice %47 {offsets = [0, 32], sizes = [32, 32], strides = [1, 1]} : vector<32x64xf32> to vector<32x32xf32>
    %50 = vector.shape_cast %37 : vector<32x1xi1> to vector<32x1xi1>
    %51 = vector.broadcast %50 : vector<32x1xi1> to vector<32x32xi1>
    %52 = arith.select %51, %48, %49 : vector<32x32xi1>, vector<32x32xf32>
    %c0_17 = arith.constant 0 : index
    %c0_18 = arith.constant 0 : index
    %c0_19 = arith.constant 0 : index
    %53 = vector.load %arg5[%c0_17, %c0_18, %c0_19] : memref<2x32x64xf32, #tpu.memory_space<vmem>>, vector<1x32x64xf32>
    %54 = vector.shape_cast %53 : vector<1x32x64xf32> to vector<32x64xf32>
    %cst_20 = arith.constant dense<0.000000e+00> : vector<32x64xf32>
    %55 = tpu.matmul %52, %54, %cst_20 {dimension_numbers = #tpu.dot_dimension_numbers<[1], [0], [0], [1], [0, 0, 1, 1], [], []>} : vector<32x32xf32>, vector<32x64xf32>, vector<32x64xf32> -> vector<32x64xf32>
    %c0_21 = arith.constant 0 : index
    %c0_22 = arith.constant 0 : index
    %c0_23 = arith.constant 0 : index
    %56 = vector.load %arg6[%c0_21, %c0_22, %c0_23] : memref<2x1x64xf32, #tpu.memory_space<vmem>>, vector<1x1x64xf32>
    %57 = vector.shape_cast %56 : vector<1x1x64xf32> to vector<1x64xf32>
    %58 = vector.broadcast %57 : vector<1x64xf32> to vector<32x64xf32>
    %59 = arith.addf %55, %58 : vector<32x64xf32>
    %60 = vector.shape_cast %59 : vector<32x64xf32> to vector<4x8x64xf32>
    %61 = vector.extract_strided_slice %60 {offsets = [0, 0, 0], sizes = [4, 8, 32], strides = [1, 1, 1]} : vector<4x8x64xf32> to vector<4x8x32xf32>
    %62 = vector.extract_strided_slice %60 {offsets = [0, 6, 32], sizes = [4, 1, 32], strides = [1, 1, 1]} : vector<4x8x64xf32> to vector<4x1x32xf32>
    %63 = vector.broadcast %62 : vector<4x1x32xf32> to vector<4x8x32xf32>
    %64 = arith.mulf %61, %63 : vector<4x8x32xf32>
    %cst_24 = arith.constant 0xFF800000 : f32
    %65 = vector.shape_cast %2 : vector<4x8x1xi1> to vector<4x8x1xi1>
    %66 = vector.broadcast %65 : vector<4x8x1xi1> to vector<4x8x32xi1>
    %67 = vector.broadcast %cst_24 : f32 to vector<4x8x32xf32>
    %68 = arith.select %66, %64, %67 : vector<4x8x32xi1>, vector<4x8x32xf32>
    %cst_25 = arith.constant dense<0xFF800000> : vector<4x32xf32>
    %69 = vector.multi_reduction <maximumf>, %68, %cst_25 [1] : vector<4x8x32xf32> to vector<4x32xf32>
    %70 = vector.shape_cast %69 : vector<4x32xf32> to vector<4x1x32xf32>
    %cst_26 = arith.constant 0.000000e+00 : f32
    %71 = vector.shape_cast %4 : vector<4x8x1xi1> to vector<4x8x1xi1>
    %72 = vector.broadcast %71 : vector<4x8x1xi1> to vector<4x8x32xi1>
    %73 = vector.shape_cast %70 : vector<4x1x32xf32> to vector<4x1x32xf32>
    %74 = vector.broadcast %73 : vector<4x1x32xf32> to vector<4x8x32xf32>
    %75 = vector.broadcast %cst_26 : f32 to vector<4x8x32xf32>
    %76 = arith.select %72, %74, %75 : vector<4x8x32xi1>, vector<4x8x32xf32>
    %77 = vector.shape_cast %2 : vector<4x8x1xi1> to vector<4x8x1xi1>
    %78 = vector.broadcast %77 : vector<4x8x1xi1> to vector<4x8x32xi1>
    %79 = arith.select %78, %64, %76 : vector<4x8x32xi1>, vector<4x8x32xf32>
    %cst_27 = arith.constant 5.000000e-01 : f32
    %80 = vector.broadcast %cst_27 : f32 to vector<4x8x32xf32>
    %81 = arith.mulf %80, %18 : vector<4x8x32xf32>
    %cst_28 = arith.constant 5.000000e-01 : f32
    %82 = vector.broadcast %cst_28 : f32 to vector<4x8x32xf32>
    %83 = arith.mulf %82, %79 : vector<4x8x32xf32>
    %84 = arith.addf %81, %83 : vector<4x8x32xf32>
    %85 = vector.shape_cast %84 : vector<4x8x32xf32> to vector<32x32xf32>
    %c1 = arith.constant 1 : index
    %c0_29 = arith.constant 0 : index
    %c0_30 = arith.constant 0 : index
    %86 = vector.load %arg3[%c1, %c0_29, %c0_30] : memref<2x32x64xf32, #tpu.memory_space<vmem>>, vector<1x32x64xf32>
    %87 = vector.shape_cast %86 : vector<1x32x64xf32> to vector<32x64xf32>
    %cst_31 = arith.constant dense<0.000000e+00> : vector<32x64xf32>
    %88 = tpu.matmul %85, %87, %cst_31 {dimension_numbers = #tpu.dot_dimension_numbers<[1], [0], [0], [1], [0, 0, 1, 1], [], []>} : vector<32x32xf32>, vector<32x64xf32>, vector<32x64xf32> -> vector<32x64xf32>
    %c1_32 = arith.constant 1 : index
    %c0_33 = arith.constant 0 : index
    %c0_34 = arith.constant 0 : index
    %89 = vector.load %arg4[%c1_32, %c0_33, %c0_34] : memref<2x1x64xf32, #tpu.memory_space<vmem>>, vector<1x1x64xf32>
    %90 = vector.shape_cast %89 : vector<1x1x64xf32> to vector<1x64xf32>
    %91 = vector.broadcast %90 : vector<1x64xf32> to vector<32x64xf32>
    %92 = arith.addf %88, %91 : vector<32x64xf32>
    %cst_35 = arith.constant 0.000000e+00 : f32
    %93 = vector.broadcast %cst_35 : f32 to vector<32x64xf32>
    %94 = arith.maximumf %92, %93 : vector<32x64xf32>
    %95 = vector.extract_strided_slice %94 {offsets = [0, 0], sizes = [32, 32], strides = [1, 1]} : vector<32x64xf32> to vector<32x32xf32>
    %96 = vector.extract_strided_slice %94 {offsets = [0, 32], sizes = [32, 32], strides = [1, 1]} : vector<32x64xf32> to vector<32x32xf32>
    %97 = vector.shape_cast %37 : vector<32x1xi1> to vector<32x1xi1>
    %98 = vector.broadcast %97 : vector<32x1xi1> to vector<32x32xi1>
    %99 = arith.select %98, %95, %96 : vector<32x32xi1>, vector<32x32xf32>
    %c1_36 = arith.constant 1 : index
    %c0_37 = arith.constant 0 : index
    %c0_38 = arith.constant 0 : index
    %100 = vector.load %arg5[%c1_36, %c0_37, %c0_38] : memref<2x32x64xf32, #tpu.memory_space<vmem>>, vector<1x32x64xf32>
    %101 = vector.shape_cast %100 : vector<1x32x64xf32> to vector<32x64xf32>
    %cst_39 = arith.constant dense<0.000000e+00> : vector<32x64xf32>
    %102 = tpu.matmul %99, %101, %cst_39 {dimension_numbers = #tpu.dot_dimension_numbers<[1], [0], [0], [1], [0, 0, 1, 1], [], []>} : vector<32x32xf32>, vector<32x64xf32>, vector<32x64xf32> -> vector<32x64xf32>
    %c1_40 = arith.constant 1 : index
    %c0_41 = arith.constant 0 : index
    %c0_42 = arith.constant 0 : index
    %103 = vector.load %arg6[%c1_40, %c0_41, %c0_42] : memref<2x1x64xf32, #tpu.memory_space<vmem>>, vector<1x1x64xf32>
    %104 = vector.shape_cast %103 : vector<1x1x64xf32> to vector<1x64xf32>
    %105 = vector.broadcast %104 : vector<1x64xf32> to vector<32x64xf32>
    %106 = arith.addf %102, %105 : vector<32x64xf32>
    %107 = vector.shape_cast %106 : vector<32x64xf32> to vector<4x8x64xf32>
    %108 = vector.extract_strided_slice %107 {offsets = [0, 0, 0], sizes = [4, 8, 32], strides = [1, 1, 1]} : vector<4x8x64xf32> to vector<4x8x32xf32>
    %109 = vector.extract_strided_slice %107 {offsets = [0, 6, 32], sizes = [4, 1, 32], strides = [1, 1, 1]} : vector<4x8x64xf32> to vector<4x1x32xf32>
    %110 = vector.broadcast %109 : vector<4x1x32xf32> to vector<4x8x32xf32>
    %111 = arith.mulf %108, %110 : vector<4x8x32xf32>
    %cst_43 = arith.constant 0xFF800000 : f32
    %112 = vector.shape_cast %2 : vector<4x8x1xi1> to vector<4x8x1xi1>
    %113 = vector.broadcast %112 : vector<4x8x1xi1> to vector<4x8x32xi1>
    %114 = vector.broadcast %cst_43 : f32 to vector<4x8x32xf32>
    %115 = arith.select %113, %111, %114 : vector<4x8x32xi1>, vector<4x8x32xf32>
    %cst_44 = arith.constant dense<0xFF800000> : vector<4x32xf32>
    %116 = vector.multi_reduction <maximumf>, %115, %cst_44 [1] : vector<4x8x32xf32> to vector<4x32xf32>
    %117 = vector.shape_cast %116 : vector<4x32xf32> to vector<4x1x32xf32>
    %cst_45 = arith.constant 0.000000e+00 : f32
    %118 = vector.shape_cast %4 : vector<4x8x1xi1> to vector<4x8x1xi1>
    %119 = vector.broadcast %118 : vector<4x8x1xi1> to vector<4x8x32xi1>
    %120 = vector.shape_cast %117 : vector<4x1x32xf32> to vector<4x1x32xf32>
    %121 = vector.broadcast %120 : vector<4x1x32xf32> to vector<4x8x32xf32>
    %122 = vector.broadcast %cst_45 : f32 to vector<4x8x32xf32>
    %123 = arith.select %119, %121, %122 : vector<4x8x32xi1>, vector<4x8x32xf32>
    %124 = vector.shape_cast %2 : vector<4x8x1xi1> to vector<4x8x1xi1>
    %125 = vector.broadcast %124 : vector<4x8x1xi1> to vector<4x8x32xi1>
    %126 = arith.select %125, %111, %123 : vector<4x8x32xi1>, vector<4x8x32xf32>
    %cst_46 = arith.constant 5.000000e-01 : f32
    %127 = vector.broadcast %cst_46 : f32 to vector<4x8x32xf32>
    %128 = arith.mulf %127, %84 : vector<4x8x32xf32>
    %cst_47 = arith.constant 5.000000e-01 : f32
    %129 = vector.broadcast %cst_47 : f32 to vector<4x8x32xf32>
    %130 = arith.mulf %129, %126 : vector<4x8x32xf32>
    %131 = arith.addf %128, %130 : vector<4x8x32xf32>
    %132 = vector.shape_cast %131 : vector<4x8x32xf32> to vector<32x32xf32>
    %c0_48 = arith.constant 0 : index
    %c0_49 = arith.constant 0 : index
    %133 = vector.load %arg7[%c0_48, %c0_49] : memref<32x64xf32, #tpu.memory_space<vmem>>, vector<32x64xf32>
    %cst_50 = arith.constant dense<0.000000e+00> : vector<32x64xf32>
    %134 = tpu.matmul %132, %133, %cst_50 {dimension_numbers = #tpu.dot_dimension_numbers<[1], [0], [0], [1], [0, 0, 1, 1], [], []>} : vector<32x32xf32>, vector<32x64xf32>, vector<32x64xf32> -> vector<32x64xf32>
    %c0_51 = arith.constant 0 : index
    %c0_52 = arith.constant 0 : index
    %135 = vector.load %arg8[%c0_51, %c0_52] : memref<1x64xf32, #tpu.memory_space<vmem>>, vector<1x64xf32>
    %136 = vector.broadcast %135 : vector<1x64xf32> to vector<32x64xf32>
    %137 = arith.addf %134, %136 : vector<32x64xf32>
    %cst_53 = arith.constant 0.000000e+00 : f32
    %138 = vector.broadcast %cst_53 : f32 to vector<32x64xf32>
    %139 = arith.maximumf %137, %138 : vector<32x64xf32>
    %c0_54 = arith.constant 0 : index
    %c0_55 = arith.constant 0 : index
    %140 = vector.load %arg9[%c0_54, %c0_55] : memref<64x1024xf32, #tpu.memory_space<vmem>>, vector<64x1024xf32>
    %cst_56 = arith.constant dense<0.000000e+00> : vector<32x1024xf32>
    %141 = tpu.matmul %139, %140, %cst_56 {dimension_numbers = #tpu.dot_dimension_numbers<[1], [0], [0], [1], [0, 0, 1, 1], [], []>} : vector<32x64xf32>, vector<64x1024xf32>, vector<32x1024xf32> -> vector<32x1024xf32>
    %c0_57 = arith.constant 0 : index
    %c0_58 = arith.constant 0 : index
    %142 = vector.load %arg10[%c0_57, %c0_58] : memref<1x1024xf32, #tpu.memory_space<vmem>>, vector<1x1024xf32>
    %143 = vector.broadcast %142 : vector<1x1024xf32> to vector<32x1024xf32>
    %144 = arith.addf %141, %143 : vector<32x1024xf32>
    %145 = vector.shape_cast %144 : vector<32x1024xf32> to vector<4x8x1024xf32>
    %146 = vector.extract_strided_slice %145 {offsets = [0, 0, 0], sizes = [4, 6, 160], strides = [1, 1, 1]} : vector<4x8x1024xf32> to vector<4x6x160xf32>
    %c0_59 = arith.constant 0 : index
    %c0_60 = arith.constant 0 : index
    %c0_61 = arith.constant 0 : index
    %147 = vector.load %arg11[%c0_59, %c0_60, %c0_61] : memref<4x6x160xf32, #tpu.memory_space<vmem>>, vector<4x6x160xf32>
    tpu.vector_store %arg11[%c0_59, %c0_60, %c0_61], %146 {strides = array<i32>} : memref<4x6x160xf32, #tpu.memory_space<vmem>>, vector<4x6x160xf32>,
    %148 = vector.extract_strided_slice %145 {offsets = [0, 0, 160], sizes = [4, 6, 1], strides = [1, 1, 1]} : vector<4x8x1024xf32> to vector<4x6x1xf32>
    %c0_62 = arith.constant 0 : index
    %c0_63 = arith.constant 0 : index
    %c0_64 = arith.constant 0 : index
    %149 = vector.load %arg13[%c0_62, %c0_63, %c0_64] : memref<4x6x1xf32, #tpu.memory_space<vmem>>, vector<4x6x1xf32>
    tpu.vector_store %arg13[%c0_62, %c0_63, %c0_64], %148 {strides = array<i32>} : memref<4x6x1xf32, #tpu.memory_space<vmem>>, vector<4x6x1xf32>,
    %150 = tpu.iota {dimensions = array<i32: 2>} : vector<1x1x320xi32>
    %c4_i32 = arith.constant 4 : i32
    %c0_i32_65 = arith.constant 0 : i32
    %151 = arith.cmpi eq, %c4_i32, %c0_i32_65 : i32
    %c1_i32_66 = arith.constant 1 : i32
    %152 = arith.select %151, %c1_i32_66, %c4_i32 : i32
    %153 = vector.broadcast %152 : i32 to vector<1x1x320xi32>
    %154 = arith.remsi %150, %153 : vector<1x1x320xi32>
    %c0_i32_67 = arith.constant 0 : i32
    %155 = vector.broadcast %c0_i32_67 : i32 to vector<1x1x320xi32>
    %156 = arith.cmpi ne, %154, %155 : vector<1x1x320xi32>
    %c0_i32_68 = arith.constant 0 : i32
    %157 = vector.broadcast %c0_i32_68 : i32 to vector<1x1x320xi32>
    %158 = arith.cmpi slt, %154, %157 : vector<1x1x320xi32>
    %c0_i32_69 = arith.constant 0 : i32
    %159 = arith.cmpi slt, %152, %c0_i32_69 : i32
    %160 = vector.broadcast %159 : i1 to vector<1x1x320xi1>
    %161 = vector.broadcast %160 : vector<1x1x320xi1> to vector<1x1x320xi1>
    %162 = arith.xori %158, %161 : vector<1x1x320xi1>
    %163 = arith.andi %162, %156 : vector<1x1x320xi1>
    %164 = vector.broadcast %152 : i32 to vector<1x1x320xi32>
    %165 = arith.addi %154, %164 : vector<1x1x320xi32>
    %166 = arith.select %163, %165, %154 : vector<1x1x320xi1>, vector<1x1x320xi32>
    %c1_i32_70 = arith.constant 1 : i32
    %167 = vector.broadcast %c1_i32_70 : i32 to vector<1x1x320xi32>
    %168 = arith.cmpi eq, %166, %167 : vector<1x1x320xi32>
    %c2_i32 = arith.constant 2 : i32
    %169 = vector.broadcast %c2_i32 : i32 to vector<1x1x320xi32>
    %170 = arith.cmpi eq, %166, %169 : vector<1x1x320xi32>
    %171 = arith.ori %168, %170 : vector<1x1x320xi1>
    %172 = vector.extract_strided_slice %145 {offsets = [0, 0, 256], sizes = [4, 6, 320], strides = [1, 1, 1]} : vector<4x8x1024xf32> to vector<4x6x320xf32>
    %173 = vector.extract_strided_slice %145 {offsets = [0, 0, 640], sizes = [4, 6, 320], strides = [1, 1, 1]} : vector<4x8x1024xf32> to vector<4x6x320xf32>
    %cst_71 = arith.constant -5.000000e-01 : f32
    %cst_72 = arith.constant 5.000000e-01 : f32
    %174 = vector.broadcast %cst_71 : f32 to vector<1x1x320xf32>
    %175 = vector.broadcast %cst_72 : f32 to vector<1x1x320xf32>
    %176 = arith.select %171, %174, %175 : vector<1x1x320xi1>, vector<1x1x320xf32>
    %177 = math.exp %172 : vector<4x6x320xf32>
    %cst_73 = arith.constant 5.000000e-01 : f32
    %178 = vector.broadcast %cst_73 : f32 to vector<4x6x320xf32>
    %179 = arith.mulf %178, %177 : vector<4x6x320xf32>
    %180 = math.exp %173 : vector<4x6x320xf32>
    %181 = vector.broadcast %176 : vector<1x1x320xf32> to vector<4x6x320xf32>
    %182 = arith.mulf %181, %180 : vector<4x6x320xf32>
    %183 = arith.addf %179, %182 : vector<4x6x320xf32>
    %c0_74 = arith.constant 0 : index
    %c0_75 = arith.constant 0 : index
    %c0_76 = arith.constant 0 : index
    %184 = vector.load %arg12[%c0_74, %c0_75, %c0_76] : memref<4x6x320xf32, #tpu.memory_space<vmem>>, vector<4x6x320xf32>
    tpu.vector_store %arg12[%c0_74, %c0_75, %c0_76], %183 {strides = array<i32>} : memref<4x6x320xf32, #tpu.memory_space<vmem>>, vector<4x6x320xf32>,
    return
  }
  func.func @transform_0(%arg0: i32) -> (i32, i32) {
    %c0_i32 = arith.constant 0 : i32
    %c0_i32_0 = arith.constant 0 : i32
    %c0_i32_1 = arith.constant 0 : i32
    return %c0_i32, %c0_i32_0 : i32, i32
  }
  func.func @transform_1(%arg0: i32) -> (i32, i32, i32) {
    %c0_i32 = arith.constant 0 : i32
    %c0_i32_0 = arith.constant 0 : i32
    %c0_i32_1 = arith.constant 0 : i32
    return %arg0, %c0_i32, %c0_i32_0 : i32, i32, i32
  }
  func.func @transform_2(%arg0: i32) -> (i32, i32, i32) {
    %c0_i32 = arith.constant 0 : i32
    %c0_i32_0 = arith.constant 0 : i32
    %c0_i32_1 = arith.constant 0 : i32
    %c0_i32_2 = arith.constant 0 : i32
    return %c0_i32, %c0_i32_0, %c0_i32_1 : i32, i32, i32
  }
  func.func @transform_3(%arg0: i32) -> (i32, i32, i32) {
    %c0_i32 = arith.constant 0 : i32
    %c0_i32_0 = arith.constant 0 : i32
    %c0_i32_1 = arith.constant 0 : i32
    %c0_i32_2 = arith.constant 0 : i32
    return %c0_i32, %c0_i32_0, %c0_i32_1 : i32, i32, i32
  }
  func.func @transform_4(%arg0: i32) -> (i32, i32, i32) {
    %c0_i32 = arith.constant 0 : i32
    %c0_i32_0 = arith.constant 0 : i32
    %c0_i32_1 = arith.constant 0 : i32
    %c0_i32_2 = arith.constant 0 : i32
    return %c0_i32, %c0_i32_0, %c0_i32_1 : i32, i32, i32
  }
  func.func @transform_5(%arg0: i32) -> (i32, i32, i32) {
    %c0_i32 = arith.constant 0 : i32
    %c0_i32_0 = arith.constant 0 : i32
    %c0_i32_1 = arith.constant 0 : i32
    %c0_i32_2 = arith.constant 0 : i32
    return %c0_i32, %c0_i32_0, %c0_i32_1 : i32, i32, i32
  }
  func.func @transform_6(%arg0: i32) -> (i32, i32) {
    %c0_i32 = arith.constant 0 : i32
    %c0_i32_0 = arith.constant 0 : i32
    %c0_i32_1 = arith.constant 0 : i32
    return %c0_i32, %c0_i32_0 : i32, i32
  }
  func.func @transform_7(%arg0: i32) -> (i32, i32) {
    %c0_i32 = arith.constant 0 : i32
    %c0_i32_0 = arith.constant 0 : i32
    %c0_i32_1 = arith.constant 0 : i32
    return %c0_i32, %c0_i32_0 : i32, i32
  }
  func.func @transform_8(%arg0: i32) -> (i32, i32) {
    %c0_i32 = arith.constant 0 : i32
    %c0_i32_0 = arith.constant 0 : i32
    %c0_i32_1 = arith.constant 0 : i32
    return %c0_i32, %c0_i32_0 : i32, i32
  }
  func.func @transform_9(%arg0: i32) -> (i32, i32) {
    %c0_i32 = arith.constant 0 : i32
    %c0_i32_0 = arith.constant 0 : i32
    %c0_i32_1 = arith.constant 0 : i32
    return %c0_i32, %c0_i32_0 : i32, i32
  }
  func.func @transform_10(%arg0: i32) -> (i32, i32, i32) {
    %c0_i32 = arith.constant 0 : i32
    %c0_i32_0 = arith.constant 0 : i32
    %c0_i32_1 = arith.constant 0 : i32
    return %arg0, %c0_i32, %c0_i32_0 : i32, i32, i32
  }
  func.func @transform_11(%arg0: i32) -> (i32, i32, i32) {
    %c0_i32 = arith.constant 0 : i32
    %c0_i32_0 = arith.constant 0 : i32
    %c0_i32_1 = arith.constant 0 : i32
    return %arg0, %c0_i32, %c0_i32_0 : i32, i32, i32
  }
  func.func @transform_12(%arg0: i32) -> (i32, i32, i32) {
    %c0_i32 = arith.constant 0 : i32
    %c0_i32_0 = arith.constant 0 : i32
    %c0_i32_1 = arith.constant 0 : i32
    return %arg0, %c0_i32, %c0_i32_0 : i32, i32, i32
  }
}

</mosaic_0001>

<llo_original>
// kernel: mcg_decoder_forward.1
$region0: #{mcg_decoder_forward.1}
  #allocation0 [shape = 'u32[]', space=smem, size = 0x4, offset = 0x4, fixed_abs, tag = 'smem constant byte address 0x4 - core index']
  #allocation1 [shape = 'u32[144,128]{1,0:T(1,128)}', space=vmem, size = 0x12000, scoped, tag = 'internal scratch']
  %s0 = inlined_call_operand.vmem [shape: f32[8,32], index: 0, kind: input, shape index: {}]
  %s1 = inlined_call_operand.hbm [shape: f32[8,1,32], index: 1, kind: input, shape index: {}]
  %s2 = inlined_call_operand.hbm [shape: f32[2,32,64], index: 2, kind: input, shape index: {}]
  %s3 = inlined_call_operand.hbm [shape: f32[2,1,64], index: 3, kind: input, shape index: {}]
  %s4 = inlined_call_operand.hbm [shape: f32[2,32,64], index: 4, kind: input, shape index: {}]
  %s5 = inlined_call_operand.hbm [shape: f32[2,1,64], index: 5, kind: input, shape index: {}]
  %s6 = inlined_call_operand.hbm [shape: f32[32,64], index: 6, kind: input, shape index: {}]
  %s7 = inlined_call_operand.hbm [shape: f32[1,64], index: 7, kind: input, shape index: {}]
  %s8 = inlined_call_operand.hbm [shape: f32[64,1024], index: 8, kind: input, shape index: {}]
  %s9 = inlined_call_operand.hbm [shape: f32[1,1024], index: 9, kind: input, shape index: {}]
  %s10 = inlined_call_operand.vmem [shape: f32[8,6,160], index: 10, kind: output, shape index: {0}]
  %s11 = inlined_call_operand.vmem [shape: f32[8,6,320], index: 11, kind: output, shape index: {1}]
  %s12 = inlined_call_operand.vmem [shape: f32[8,6,1], index: 12, kind: output, shape index: {2}]
  %13 = xla_tuple %s10, %s11, %s12
  %s14 = sld [smem:[#allocation0]]
  $region125: #{mcg_decoder_forward.1} parent=0
    _
  %s16 = ssub.s32 1, %s14
  %s17 = scalar_select 0, %s16, %s14
  $region1: #{mcg_decoder_forward.1} parent=0
    #allocation2 [shape = 'u8[4096]{0}', space=vmem, size = 0x1000, scoped, tag = 'input window, operand 1']
    #allocation3 [shape = 's32[2]{0}', space=sflag, size = 0x8, scoped, tag = 'scoped memory for mcg_decoder_forward.1']
    #allocation4 [shape = 'u8[32768]{0}', space=vmem, size = 0x8000, scoped, tag = 'input window, operand 2, single buffered']
    #allocation5 [shape = 's32[1]{0}', space=sflag, size = 0x4, scoped, tag = 'scoped memory for mcg_decoder_forward.1']
    #allocation6 [shape = 'u8[1024]{0}', space=vmem, size = 0x400, scoped, tag = 'input window, operand 3, single buffered']
    #allocation7 [shape = 'u8[32768]{0}', space=vmem, size = 0x8000, scoped, tag = 'input window, operand 4, single buffered']
    #allocation8 [shape = 's32[1]{0}', space=sflag, size = 0x4, scoped, tag = 'scoped memory for mcg_decoder_forward.1']
    #allocation9 [shape = 'u8[1024]{0}', space=vmem, size = 0x400, scoped, tag = 'input window, operand 5, single buffered']
    #allocation10 [shape = 'u8[16384]{0}', space=vmem, size = 0x4000, scoped, tag = 'input window, operand 6, single buffered']
    #allocation11 [shape = 's32[1]{0}', space=sflag, size = 0x4, scoped, tag = 'scoped memory for mcg_decoder_forward.1']
    #allocation12 [shape = 'u8[512]{0}', space=vmem, size = 0x400, scoped, tag = 'input window, operand 7, single buffered']
    #allocation13 [shape = 'u8[262144]{0}', space=vmem, size = 0x40000, scoped, tag = 'input window, operand 8, single buffered']
    #allocation14 [shape = 's32[1]{0}', space=sflag, size = 0x4, scoped, tag = 'scoped memory for mcg_decoder_forward.1']
    #allocation15 [shape = 'u8[4096]{0}', space=vmem, size = 0x1000, scoped, tag = 'input window, operand 9, single buffered']
    %18 = vsyncpa [#allocation3], 0
    %s19 = scalar_lea.sflag [#allocation3], 1
    %20 = vsyncpa %s19, 0
    %21 = vsyncpa [#allocation5], 0
    %22 = vsyncpa [#allocation8], 0
    %23 = vsyncpa [#allocation11], 0
    %24 = vsyncpa [#allocation14], 0
    loop: start=0, step=1, limit=4
    $region2: #{mcg_decoder_forward.1} parent=1 // loop_pre_header
      _
    $region3: #{mcg_decoder_forward.1} parent=1 // loop_header
      %s26 = sphi 0, %s30
      %p27 = scmp.ge.s32.totalorder %s26, 4
      %s34 = sphi 0, %s34
      %s36 = sphi 0, %s34
      %s37 = sphi 0, %s36
      %s51 = sphi 0, %s37
      %s57 = sphi 0, %s59
      %s60 = sphi 0, %s57
      %s61 = sphi 0, %s60
      %s77 = sphi 0, %s61
      %s81 = sphi 0, %s81
      %s83 = sphi 0, %s81
      %s84 = sphi 0, %s83
      %s98 = sphi 0, %s84
      %s102 = sphi 0, %s102
      %s104 = sphi 0, %s102
      %s105 = sphi 0, %s104
      %s119 = sphi 0, %s105
      %s123 = sphi 0, %s123
      %s125 = sphi 0, %s123
      %s126 = sphi 0, %s125
      %s140 = sphi 0, %s126
      %s144 = sphi 0, %s144
      %s146 = sphi 0, %s144
      %s147 = sphi 0, %s146
      %s161 = sphi 0, %s147
      %s165 = sphi 0, %s165
      %s167 = sphi 0, %s165
      %s168 = sphi 0, %s167
      %s182 = sphi 0, %s168
      %s186 = sphi 0, %s186
      %s188 = sphi 0, %s186
      %s189 = sphi 0, %s188
      %s203 = sphi 0, %s189
      %s207 = sphi 0, %s207
      %s209 = sphi 0, %s207
      %s210 = sphi 0, %s209
      %s224 = sphi 0, %s210
      %s228 = sphi 0, %s228
      %s230 = sphi 0, %s228
      %s231 = sphi 0, %s230
      %s245 = sphi 0, %s231
      %s251 = sphi 0, %s253
      %s254 = sphi 0, %s251
      %s255 = sphi 0, %s254
      %s271 = sphi 0, %s255
      %s277 = sphi 0, %s279
      %s280 = sphi 0, %s277
      %s281 = sphi 0, %s280
      %s297 = sphi 0, %s281
      %s303 = sphi 0, %s305
      %s306 = sphi 0, %s303
      %s307 = sphi 0, %s306
      %s323 = sphi 0, %s307
    $region4: #{mcg_decoder_forward.1} parent=1 // loop_header_branch
      %29 = sbr.rel (%p27) target = $region8
    $region5: #{mcg_decoder_forward.1} parent=1 // loop_body
      %s31 = ssub.s32 %s26, 1
      %s32 = ssub.s32 %s26, 2
      %s33 = sadd.s32 %s26, 1
      %s35 = sadd.s32 %s34, 1
      %p38 = scmp.eq.s32.totalorder %s26, 1
      %p39 = scmp.ne.s32.totalorder %s34, %s36
      %p40 = scmp.eq.s32.totalorder %s26, 0
      %p41 = por %p39, %p40
      %p42 = scmp.ne.s32.totalorder %s34, %s36
      %p43 = scmp.eq.s32.totalorder %s31, 1
      %p44 = por %p42, %p43
      %p45 = scmp.ne.s32.totalorder %s36, %s37
      %p46 = scmp.eq.s32.totalorder %s31, 0
      %p47 = por %p45, %p46
      %p48 = scmp.ne.s32.totalorder %s36, %s37
      %p49 = scmp.eq.s32.totalorder %s32, 1
      %p50 = por %p48, %p49
      %p52 = scmp.ne.s32.totalorder %s37, %s51
      %p53 = scmp.eq.s32.totalorder %s32, 0
      %p54 = por %p52, %p53
      %s55 = ssub.s32 %s26, %s33
      %p56 = scmp.eq.s32.totalorder %s55, 0
      %s58 = sadd.s32 %s57, 1
      %s59 = scalar_select %p56, %s57, %s58
      %p62 = pneg %p56
      %p63 = scmp.eq.s32.totalorder %s26, 1
      %p64 = por %p62, %p63
      %p65 = scmp.ne.s32.totalorder %s57, %s60
      %p66 = scmp.eq.s32.totalorder %s26, 0
      %p67 = por %p65, %p66
      %p68 = scmp.ne.s32.totalorder %s57, %s60
      %p69 = scmp.eq.s32.totalorder %s31, 1
      %p70 = por %p68, %p69
      %p71 = scmp.ne.s32.totalorder %s60, %s61
      %p72 = scmp.eq.s32.totalorder %s31, 0
      %p73 = por %p71, %p72
      %p74 = scmp.ne.s32.totalorder %s60, %s61
      %p75 = scmp.eq.s32.totalorder %s32, 1
      %p76 = por %p74, %p75
      %p78 = scmp.ne.s32.totalorder %s61, %s77
      %p79 = scmp.eq.s32.totalorder %s32, 0
      %p80 = por %p78, %p79
      %s82 = sadd.s32 %s81, 1
      %p85 = scmp.eq.s32.totalorder %s26, 1
      %p86 = scmp.ne.s32.totalorder %s81, %s83
      %p87 = scmp.eq.s32.totalorder %s26, 0
      %p88 = por %p86, %p87
      %p89 = scmp.ne.s32.totalorder %s81, %s83
      %p90 = scmp.eq.s32.totalorder %s31, 1
      %p91 = por %p89, %p90
      %p92 = scmp.ne.s32.totalorder %s83, %s84
      %p93 = scmp.eq.s32.totalorder %s31, 0
      %p94 = por %p92, %p93
      %p95 = scmp.ne.s32.totalorder %s83, %s84
      %p96 = scmp.eq.s32.totalorder %s32, 1
      %p97 = por %p95, %p96
      %p99 = scmp.ne.s32.totalorder %s84, %s98
      %p100 = scmp.eq.s32.totalorder %s32, 0
      %p101 = por %p99, %p100
      %s103 = sadd.s32 %s102, 1
      %p106 = scmp.eq.s32.totalorder %s26, 1
      %p107 = scmp.ne.s32.totalorder %s102, %s104
      %p108 = scmp.eq.s32.totalorder %s26, 0
      %p109 = por %p107, %p108
      %p110 = scmp.ne.s32.totalorder %s102, %s104
      %p111 = scmp.eq.s32.totalorder %s31, 1
      %p112 = por %p110, %p111
      %p113 = scmp.ne.s32.totalorder %s104, %s105
      %p114 = scmp.eq.s32.totalorder %s31, 0
      %p115 = por %p113, %p114
      %p116 = scmp.ne.s32.totalorder %s104, %s105
      %p117 = scmp.eq.s32.totalorder %s32, 1
      %p118 = por %p116, %p117
      %p120 = scmp.ne.s32.totalorder %s105, %s119
      %p121 = scmp.eq.s32.totalorder %s32, 0
      %p122 = por %p120, %p121
      %s124 = sadd.s32 %s123, 1
      %p127 = scmp.eq.s32.totalorder %s26, 1
      %p128 = scmp.ne.s32.totalorder %s123, %s125
      %p129 = scmp.eq.s32.totalorder %s26, 0
      %p130 = por %p128, %p129
      %p131 = scmp.ne.s32.totalorder %s123, %s125
      %p132 = scmp.eq.s32.totalorder %s31, 1
      %p133 = por %p131, %p132
      %p134 = scmp.ne.s32.totalorder %s125, %s126
      %p135 = scmp.eq.s32.totalorder %s31, 0
      %p136 = por %p134, %p135
      %p137 = scmp.ne.s32.totalorder %s125, %s126
      %p138 = scmp.eq.s32.totalorder %s32, 1
      %p139 = por %p137, %p138
      %p141 = scmp.ne.s32.totalorder %s126, %s140
      %p142 = scmp.eq.s32.totalorder %s32, 0
      %p143 = por %p141, %p142
      %s145 = sadd.s32 %s144, 1
      %p148 = scmp.eq.s32.totalorder %s26, 1
      %p149 = scmp.ne.s32.totalorder %s144, %s146
      %p150 = scmp.eq.s32.totalorder %s26, 0
      %p151 = por %p149, %p150
      %p152 = scmp.ne.s32.totalorder %s144, %s146
      %p153 = scmp.eq.s32.totalorder %s31, 1
      %p154 = por %p152, %p153
      %p155 = scmp.ne.s32.totalorder %s146, %s147
      %p156 = scmp.eq.s32.totalorder %s31, 0
      %p157 = por %p155, %p156
      %p158 = scmp.ne.s32.totalorder %s146, %s147
      %p159 = scmp.eq.s32.totalorder %s32, 1
      %p160 = por %p158, %p159
      %p162 = scmp.ne.s32.totalorder %s147, %s161
      %p163 = scmp.eq.s32.totalorder %s32, 0
      %p164 = por %p162, %p163
      %s166 = sadd.s32 %s165, 1
      %p169 = scmp.eq.s32.totalorder %s26, 1
      %p170 = scmp.ne.s32.totalorder %s165, %s167
      %p171 = scmp.eq.s32.totalorder %s26, 0
      %p172 = por %p170, %p171
      %p173 = scmp.ne.s32.totalorder %s165, %s167
      %p174 = scmp.eq.s32.totalorder %s31, 1
      %p175 = por %p173, %p174
      %p176 = scmp.ne.s32.totalorder %s167, %s168
      %p177 = scmp.eq.s32.totalorder %s31, 0
      %p178 = por %p176, %p177
      %p179 = scmp.ne.s32.totalorder %s167, %s168
      %p180 = scmp.eq.s32.totalorder %s32, 1
      %p181 = por %p179, %p180
      %p183 = scmp.ne.s32.totalorder %s168, %s182
      %p184 = scmp.eq.s32.totalorder %s32, 0
      %p185 = por %p183, %p184
      %s187 = sadd.s32 %s186, 1
      %p190 = scmp.eq.s32.totalorder %s26, 1
      %p191 = scmp.ne.s32.totalorder %s186, %s188
      %p192 = scmp.eq.s32.totalorder %s26, 0
      %p193 = por %p191, %p192
      %p194 = scmp.ne.s32.totalorder %s186, %s188
      %p195 = scmp.eq.s32.totalorder %s31, 1
      %p196 = por %p194, %p195
      %p197 = scmp.ne.s32.totalorder %s188, %s189
      %p198 = scmp.eq.s32.totalorder %s31, 0
      %p199 = por %p197, %p198
      %p200 = scmp.ne.s32.totalorder %s188, %s189
      %p201 = scmp.eq.s32.totalorder %s32, 1
      %p202 = por %p200, %p201
      %p204 = scmp.ne.s32.totalorder %s189, %s203
      %p205 = scmp.eq.s32.totalorder %s32, 0
      %p206 = por %p204, %p205
      %s208 = sadd.s32 %s207, 1
      %p211 = scmp.eq.s32.totalorder %s26, 1
      %p212 = scmp.ne.s32.totalorder %s207, %s209
      %p213 = scmp.eq.s32.totalorder %s26, 0
      %p214 = por %p212, %p213
      %p215 = scmp.ne.s32.totalorder %s207, %s209
      %p216 = scmp.eq.s32.totalorder %s31, 1
      %p217 = por %p215, %p216
      %p218 = scmp.ne.s32.totalorder %s209, %s210
      %p219 = scmp.eq.s32.totalorder %s31, 0
      %p220 = por %p218, %p219
      %p221 = scmp.ne.s32.totalorder %s209, %s210
      %p222 = scmp.eq.s32.totalorder %s32, 1
      %p223 = por %p221, %p222
      %p225 = scmp.ne.s32.totalorder %s210, %s224
      %p226 = scmp.eq.s32.totalorder %s32, 0
      %p227 = por %p225, %p226
      %s229 = sadd.s32 %s228, 1
      %p232 = scmp.eq.s32.totalorder %s26, 1
      %p233 = scmp.ne.s32.totalorder %s228, %s230
      %p234 = scmp.eq.s32.totalorder %s26, 0
      %p235 = por %p233, %p234
      %p236 = scmp.ne.s32.totalorder %s228, %s230
      %p237 = scmp.eq.s32.totalorder %s31, 1
      %p238 = por %p236, %p237
      %p239 = scmp.ne.s32.totalorder %s230, %s231
      %p240 = scmp.eq.s32.totalorder %s31, 0
      %p241 = por %p239, %p240
      %p242 = scmp.ne.s32.totalorder %s230, %s231
      %p243 = scmp.eq.s32.totalorder %s32, 1
      %p244 = por %p242, %p243
      %p246 = scmp.ne.s32.totalorder %s231, %s245
      %p247 = scmp.eq.s32.totalorder %s32, 0
      %p248 = por %p246, %p247
      %s249 = ssub.s32 %s26, %s33
      %p250 = scmp.eq.s32.totalorder %s249, 0
      %s252 = sadd.s32 %s251, 1
      %s253 = scalar_select %p250, %s251, %s252
      %p256 = pneg %p250
      %p257 = scmp.eq.s32.totalorder %s26, 1
      %p258 = por %p256, %p257
      %p259 = scmp.ne.s32.totalorder %s251, %s254
      %p260 = scmp.eq.s32.totalorder %s26, 0
      %p261 = por %p259, %p260
      %p262 = scmp.ne.s32.totalorder %s251, %s254
      %p263 = scmp.eq.s32.totalorder %s31, 1
      %p264 = por %p262, %p263
      %p265 = scmp.ne.s32.totalorder %s254, %s255
      %p266 = scmp.eq.s32.totalorder %s31, 0
      %p267 = por %p265, %p266
      %p268 = scmp.ne.s32.totalorder %s254, %s255
      %p269 = scmp.eq.s32.totalorder %s32, 1
      %p270 = por %p268, %p269
      %p272 = scmp.ne.s32.totalorder %s255, %s271
      %p273 = scmp.eq.s32.totalorder %s32, 0
      %p274 = por %p272, %p273
      %s275 = ssub.s32 %s26, %s33
      %p276 = scmp.eq.s32.totalorder %s275, 0
      %s278 = sadd.s32 %s277, 1
      %s279 = scalar_select %p276, %s277, %s278
      %p282 = pneg %p276
      %p283 = scmp.eq.s32.totalorder %s26, 1
      %p284 = por %p282, %p283
      %p285 = scmp.ne.s32.totalorder %s277, %s280
      %p286 = scmp.eq.s32.totalorder %s26, 0
      %p287 = por %p285, %p286
      %p288 = scmp.ne.s32.totalorder %s277, %s280
      %p289 = scmp.eq.s32.totalorder %s31, 1
      %p290 = por %p288, %p289
      %p291 = scmp.ne.s32.totalorder %s280, %s281
      %p292 = scmp.eq.s32.totalorder %s31, 0
      %p293 = por %p291, %p292
      %p294 = scmp.ne.s32.totalorder %s280, %s281
      %p295 = scmp.eq.s32.totalorder %s32, 1
      %p296 = por %p294, %p295
      %p298 = scmp.ne.s32.totalorder %s281, %s297
      %p299 = scmp.eq.s32.totalorder %s32, 0
      %p300 = por %p298, %p299
      %s301 = ssub.s32 %s26, %s33
      %p302 = scmp.eq.s32.totalorder %s301, 0
      %s304 = sadd.s32 %s303, 1
      %s305 = scalar_select %p302, %s303, %s304
      %p308 = pneg %p302
      %p309 = scmp.eq.s32.totalorder %s26, 1
      %p310 = por %p308, %p309
      %p311 = scmp.ne.s32.totalorder %s303, %s306
      %p312 = scmp.eq.s32.totalorder %s26, 0
      %p313 = por %p311, %p312
      %p314 = scmp.ne.s32.totalorder %s303, %s306
      %p315 = scmp.eq.s32.totalorder %s31, 1
      %p316 = por %p314, %p315
      %p317 = scmp.ne.s32.totalorder %s306, %s307
      %p318 = scmp.eq.s32.totalorder %s31, 0
      %p319 = por %p317, %p318
      %p320 = scmp.ne.s32.totalorder %s306, %s307
      %p321 = scmp.eq.s32.totalorder %s32, 1
      %p322 = por %p320, %p321
      %p324 = scmp.ne.s32.totalorder %s307, %s323
      %p325 = scmp.eq.s32.totalorder %s32, 0
      %p326 = por %p324, %p325
      %p327 = scmp.le.s32.totalorder 1, %s26
      %p328 = scmp.lt.s32.totalorder %s26, 3
      %p329 = pnand %p327, %p328
      %p330 = pneg %p329
      // Predicated region
      $region9: #{mcg_decoder_forward.1} parent=5 // pred_check
        _
      $region10: #{mcg_decoder_forward.1} parent=5 // pred_check_branch
        %332 = sbr.rel (%p329) target = $region12
      $region11: #{mcg_decoder_forward.1} parent=5 // pred_region
        %s333 = ssub.s32 %s26, 1
        // Predicated region
        $region13: #{mcg_decoder_forward.1} parent=11 // pred_check
          %p334 = pneg %p47
        $region14: #{mcg_decoder_forward.1} parent=11 // pred_check_branch
          %336 = sbr.rel (%p334) target = $region16
        $region15: #{mcg_decoder_forward.1} parent=11 // pred_region
          _
        $region16: #{mcg_decoder_forward.1} parent=11 // pred_fallthru
          _
        // Predicated region
        $region17: #{mcg_decoder_forward.1} parent=11 // pred_check
          %p337 = pneg %p94
        $region18: #{mcg_decoder_forward.1} parent=11 // pred_check_branch
          %339 = sbr.rel (%p337) target = $region20
        $region19: #{mcg_decoder_forward.1} parent=11 // pred_region
          %s341 = ssub.s32 1024, 1024
          %342 = vsyncadd [#allocation5], %s341
          %s343 = sshll.u32 [#allocation4], 4
          %s344 = int_to_ptr.vmem [resolvable:$true] %s343
          %349 = dma.hbm_to_vmem [thread:$0]  %s2, 1024, %s344, [#allocation5], 128, 128, 8
        $region20: #{mcg_decoder_forward.1} parent=11 // pred_fallthru
          _
        // Predicated region
        $region21: #{mcg_decoder_forward.1} parent=11 // pred_check
          %p350 = pneg %p115
        $region22: #{mcg_decoder_forward.1} parent=11 // pred_check_branch
          %352 = sbr.rel (%p350) target = $region24
        $region23: #{mcg_decoder_forward.1} parent=11 // pred_region
          %s354 = ssub.s32 32, 32
          %355 = vsyncadd [#allocation5], %s354
          %s356 = sshll.u32 [#allocation6], 4
          %s357 = int_to_ptr.vmem [resolvable:$true] %s356
          %362 = dma.hbm_to_vmem [thread:$0]  %s3, 32, %s357, [#allocation5], 16, 16, 1
        $region24: #{mcg_decoder_forward.1} parent=11 // pred_fallthru
          _
        // Predicated region
        $region25: #{mcg_decoder_forward.1} parent=11 // pred_check
          %p363 = pneg %p136
        $region26: #{mcg_decoder_forward.1} parent=11 // pred_check_branch
          %365 = sbr.rel (%p363) target = $region28
        $region27: #{mcg_decoder_forward.1} parent=11 // pred_region
          %s367 = ssub.s32 1024, 1024
          %368 = vsyncadd [#allocation8], %s367
          %s369 = sshll.u32 [#allocation7], 4
          %s370 = int_to_ptr.vmem [resolvable:$true] %s369
          %375 = dma.hbm_to_vmem [thread:$0]  %s4, 1024, %s370, [#allocation8], 128, 128, 8
        $region28: #{mcg_decoder_forward.1} parent=11 // pred_fallthru
          _
        // Predicated region
        $region29: #{mcg_decoder_forward.1} parent=11 // pred_check
          %p376 = pneg %p157
        $region30: #{mcg_decoder_forward.1} parent=11 // pred_check_branch
          %378 = sbr.rel (%p376) target = $region32
        $region31: #{mcg_decoder_forward.1} parent=11 // pred_region
          %s380 = ssub.s32 32, 32
          %381 = vsyncadd [#allocation8], %s380
          %s382 = sshll.u32 [#allocation9], 4
          %s383 = int_to_ptr.vmem [resolvable:$true] %s382
          %388 = dma.hbm_to_vmem [thread:$0]  %s5, 32, %s383, [#allocation8], 16, 16, 1
        $region32: #{mcg_decoder_forward.1} parent=11 // pred_fallthru
          _
        // Predicated region
        $region33: #{mcg_decoder_forward.1} parent=11 // pred_check
          %p389 = pneg %p178
        $region34: #{mcg_decoder_forward.1} parent=11 // pred_check_branch
          %391 = sbr.rel (%p389) target = $region36
        $region35: #{mcg_decoder_forward.1} parent=11 // pred_region
          %s393 = ssub.s32 512, 512
          %394 = vsyncadd [#allocation11], %s393
          %s395 = sshll.u32 [#allocation10], 4
          %s396 = int_to_ptr.vmem [resolvable:$true] %s395
          %401 = dma.hbm_to_vmem [thread:$0]  %s6, 512, %s396, [#allocation11], 128, 128, 8
        $region36: #{mcg_decoder_forward.1} parent=11 // pred_fallthru
          _
        // Predicated region
        $region37: #{mcg_decoder_forward.1} parent=11 // pred_check
          %p402 = pneg %p199
        $region38: #{mcg_decoder_forward.1} parent=11 // pred_check_branch
          %404 = sbr.rel (%p402) target = $region40
        $region39: #{mcg_decoder_forward.1} parent=11 // pred_region
          %s406 = ssub.s32 16, 16
          %407 = vsyncadd [#allocation11], %s406
          %s409 = sshll.u32 [#allocation12], 4
          %s410 = int_to_ptr.vmem [resolvable:$true] %s409
          %412 = dma.hbm_to_vmem [thread:$0]  %s7, 16, %s410, [#allocation11]
        $region40: #{mcg_decoder_forward.1} parent=11 // pred_fallthru
          _
        // Predicated region
        $region41: #{mcg_decoder_forward.1} parent=11 // pred_check
          %p413 = pneg %p220
        $region42: #{mcg_decoder_forward.1} parent=11 // pred_check_branch
          %415 = sbr.rel (%p413) target = $region44
        $region43: #{mcg_decoder_forward.1} parent=11 // pred_region
          %s417 = ssub.s32 8192, 8192
          %418 = vsyncadd [#allocation14], %s417
          %s419 = sshll.u32 [#allocation13], 4
          %s420 = int_to_ptr.vmem [resolvable:$true] %s419
          %425 = dma.hbm_to_vmem [thread:$0]  %s8, 8192, %s420, [#allocation14], 1024, 1024, 64
        $region44: #{mcg_decoder_forward.1} parent=11 // pred_fallthru
          _
        // Predicated region
        $region45: #{mcg_decoder_forward.1} parent=11 // pred_check
          %p426 = pneg %p241
        $region46: #{mcg_decoder_forward.1} parent=11 // pred_check_branch
          %428 = sbr.rel (%p426) target = $region48
        $region47: #{mcg_decoder_forward.1} parent=11 // pred_region
          %s430 = ssub.s32 128, 128
          %431 = vsyncadd [#allocation14], %s430
          %s433 = sshll.u32 [#allocation15], 4
          %s434 = int_to_ptr.vmem [resolvable:$true] %s433
          %436 = dma.hbm_to_vmem [thread:$0]  %s9, 128, %s434, [#allocation14]
        $region48: #{mcg_decoder_forward.1} parent=11 // pred_fallthru
          _
      $region12: #{mcg_decoder_forward.1} parent=5 // pred_fallthru
        _
      %p437 = scmp.lt.s32.totalorder %s26, 2
      // Predicated region
      $region49: #{mcg_decoder_forward.1} parent=5 // pred_check
        %p438 = pneg %p437
      $region50: #{mcg_decoder_forward.1} parent=5 // pred_check_branch
        %440 = sbr.rel (%p438) target = $region52
      $region51: #{mcg_decoder_forward.1} parent=5 // pred_region
        // Predicated region
        $region53: #{mcg_decoder_forward.1} parent=51 // pred_check
          %p441 = pneg %p67
        $region54: #{mcg_decoder_forward.1} parent=51 // pred_check_branch
          %443 = sbr.rel (%p441) target = $region56
        $region55: #{mcg_decoder_forward.1} parent=51 // pred_region
          %s444 = sand.u32 %s57, 1
          %s445 = scalar_lea.sflag [#allocation3], %s444
          %s446 = sand.u32 %s57, 1
          %s447 = smul.addr %s446, 4
          %s448 = scalar_lea.vmem [#allocation2], %s447
          %s449 = smul.u32 4, %s26
          %s451 = ssub.s32 64, 64
          %452 = vsyncadd %s445, %s451
          %s453 = smul.addr %s449, 16
          %s454 = scalar_lea.hbm %s1, %s453
          %s455 = sshll.u32 %s448, 4
          %s456 = int_to_ptr.vmem [resolvable:$true] %s455
          %461 = dma.hbm_to_vmem [thread:$0]  %s454, 64, %s456, %s445, 16, 16, 1
        $region56: #{mcg_decoder_forward.1} parent=51 // pred_fallthru
          _
      $region52: #{mcg_decoder_forward.1} parent=5 // pred_fallthru
        _
      %p462 = scmp.le.s32.totalorder 1, %s26
      %p463 = scmp.lt.s32.totalorder %s26, 3
      %p464 = pnand %p462, %p463
      %p465 = pneg %p464
      // Predicated region
      $region57: #{mcg_decoder_forward.1} parent=5 // pred_check
        _
      $region58: #{mcg_decoder_forward.1} parent=5 // pred_check_branch
        %467 = sbr.rel (%p464) target = $region60
      $region59: #{mcg_decoder_forward.1} parent=5 // pred_region
        %s468 = ssub.s32 %s26, 1
        %s469 = sand.u32 %s60, 1
        %s470 = scalar_lea.sflag [#allocation3], %s469
        %s471 = sand.u32 %s60, 1
        %s472 = smul.addr %s471, 4
        %s473 = scalar_lea.vmem [#allocation2], %s472
        // Predicated region
        $region61: #{mcg_decoder_forward.1} parent=59 // pred_check
          %p474 = pneg %p73
        $region62: #{mcg_decoder_forward.1} parent=59 // pred_check_branch
          %476 = sbr.rel (%p474) target = $region64
        $region63: #{mcg_decoder_forward.1} parent=59 // pred_region
          %477 = dma.done %s470, 64
        $region64: #{mcg_decoder_forward.1} parent=59 // pred_fallthru
          _
        // Predicated region
        $region65: #{mcg_decoder_forward.1} parent=59 // pred_check
          %p478 = pneg %p94
        $region66: #{mcg_decoder_forward.1} parent=59 // pred_check_branch
          %480 = sbr.rel (%p478) target = $region68
        $region67: #{mcg_decoder_forward.1} parent=59 // pred_region
          %481 = dma.done [#allocation5], 1024
        $region68: #{mcg_decoder_forward.1} parent=59 // pred_fallthru
          _
        // Predicated region
        $region69: #{mcg_decoder_forward.1} parent=59 // pred_check
          %p482 = pneg %p115
        $region70: #{mcg_decoder_forward.1} parent=59 // pred_check_branch
          %484 = sbr.rel (%p482) target = $region72
        $region71: #{mcg_decoder_forward.1} parent=59 // pred_region
          %485 = dma.done [#allocation5], 32
        $region72: #{mcg_decoder_forward.1} parent=59 // pred_fallthru
          _
        // Predicated region
        $region73: #{mcg_decoder_forward.1} parent=59 // pred_check
          %p486 = pneg %p136
        $region74: #{mcg_decoder_forward.1} parent=59 // pred_check_branch
          %488 = sbr.rel (%p486) target = $region76
        $region75: #{mcg_decoder_forward.1} parent=59 // pred_region
          %489 = dma.done [#allocation8], 1024
        $region76: #{mcg_decoder_forward.1} parent=59 // pred_fallthru
          _
        // Predicated region
        $region77: #{mcg_decoder_forward.1} parent=59 // pred_check
          %p490 = pneg %p157
        $region78: #{mcg_decoder_forward.1} parent=59 // pred_check_branch
          %492 = sbr.rel (%p490) target = $region80
        $region79: #{mcg_decoder_forward.1} parent=59 // pred_region
          %493 = dma.done [#allocation8], 32
        $region80: #{mcg_decoder_forward.1} parent=59 // pred_fallthru
          _
        // Predicated region
        $region81: #{mcg_decoder_forward.1} parent=59 // pred_check
          %p494 = pneg %p178
        $region82: #{mcg_decoder_forward.1} parent=59 // pred_check_branch
          %496 = sbr.rel (%p494) target = $region84
        $region83: #{mcg_decoder_forward.1} parent=59 // pred_region
          %497 = dma.done [#allocation11], 512
        $region84: #{mcg_decoder_forward.1} parent=59 // pred_fallthru
          _
        // Predicated region
        $region85: #{mcg_decoder_forward.1} parent=59 // pred_check
          %p498 = pneg %p199
        $region86: #{mcg_decoder_forward.1} parent=59 // pred_check_branch
          %500 = sbr.rel (%p498) target = $region88
        $region87: #{mcg_decoder_forward.1} parent=59 // pred_region
          %501 = dma.done [#allocation11], 16
        $region88: #{mcg_decoder_forward.1} parent=59 // pred_fallthru
          _
        // Predicated region
        $region89: #{mcg_decoder_forward.1} parent=59 // pred_check
          %p502 = pneg %p220
        $region90: #{mcg_decoder_forward.1} parent=59 // pred_check_branch
          %504 = sbr.rel (%p502) target = $region92
        $region91: #{mcg_decoder_forward.1} parent=59 // pred_region
          %505 = dma.done [#allocation14], 8192
        $region92: #{mcg_decoder_forward.1} parent=59 // pred_fallthru
          _
        // Predicated region
        $region93: #{mcg_decoder_forward.1} parent=59 // pred_check
          %p506 = pneg %p241
        $region94: #{mcg_decoder_forward.1} parent=59 // pred_check_branch
          %508 = sbr.rel (%p506) target = $region96
        $region95: #{mcg_decoder_forward.1} parent=59 // pred_region
          %509 = dma.done [#allocation14], 128
        $region96: #{mcg_decoder_forward.1} parent=59 // pred_fallthru
          _
        %p510 = pneg %p47
        %p511 = pneg %p44
        %s512 = sand.u32 %s60, 1
        %s513 = scalar_lea.sflag [#allocation3], %s512
        %s514 = sand.u32 %s60, 1
        %s515 = smul.addr %s514, 4
        %s516 = scalar_lea.vmem [#allocation2], %s515
        %p517 = pneg %p73
        %p518 = pneg %p70
        %p519 = pneg %p94
        %p520 = pneg %p91
        %p521 = pneg %p115
        %p522 = pneg %p112
        %p523 = pneg %p136
        %p524 = pneg %p133
        %p525 = pneg %p157
        %p526 = pneg %p154
        %p527 = pneg %p178
        %p528 = pneg %p175
        %p529 = pneg %p199
        %p530 = pneg %p196
        %p531 = pneg %p220
        %p532 = pneg %p217
        %p533 = pneg %p241
        %p534 = pneg %p238
        %p535 = pneg %p267
        %p536 = pneg %p264
        %s537 = smul.u32 4, %s31
        %p538 = scmp.lt.s32.totalorder %s537, 7
        %s539 = scalar_select %p538, %s537, 7
        %s540 = smul.addr %s539, 2
        %s541 = smul.addr %s540, 8
        %s542 = scalar_lea.vmem %s10, %s541
        %p543 = pneg %p293
        %p544 = pneg %p290
        %s545 = smul.u32 4, %s31
        %p546 = scmp.lt.s32.totalorder %s545, 7
        %s547 = scalar_select %p546, %s545, 7
        %s548 = smul.addr %s547, 3
        %s549 = smul.addr %s548, 8
        %s550 = scalar_lea.vmem %s11, %s549
        %p551 = pneg %p319
        %p552 = pneg %p316
        %s553 = smul.u32 4, %s31
        %p554 = scmp.lt.s32.totalorder %s553, 7
        %s555 = scalar_select %p554, %s553, 7
        %s556 = smul.addr %s555, 8
        %s557 = scalar_lea.vmem %s12, %s556
        %s558 = smul.u32 4, %s31
        %s559 = smul.u32 4, %s31
        %p560 = scmp.lt.s32.totalorder %s559, 7
        %s561 = scalar_select %p560, %s559, 7
        %s562 = smul.addr %s561, 2
        %s563 = smul.addr %s562, 8
        %s564 = scalar_lea.vmem %s10, %s563
        %s565 = smul.u32 4, %s31
        %s566 = smul.u32 4, %s31
        %p567 = scmp.lt.s32.totalorder %s566, 7
        %s568 = scalar_select %p567, %s566, 7
        %s569 = smul.addr %s568, 3
        %s570 = smul.addr %s569, 8
        %s571 = scalar_lea.vmem %s11, %s570
        %s572 = smul.u32 4, %s31
        %s573 = smul.u32 4, %s31
        %p574 = scmp.lt.s32.totalorder %s573, 7
        %s575 = scalar_select %p574, %s573, 7
        %s576 = smul.addr %s575, 8
        %s577 = scalar_lea.vmem %s12, %s576
        %s578 = smul.u32 4, %s31
        %v579 = vlaneseq
        %v580 = vshrl.u32 %v579, 7
        %vm581 = vcmp.lt.s32.totalorder %v580, 6
        %vm582 = vcmp.eq.s32.totalorder %v580, 6
        %v583 = vld [vmem:[%s0] sm:$0xff]
        %v584 = vld [vmem:[%s473] sm:$0x1]
        %v585 = vld [vmem:[%s473 + $0x1] sm:$0x1]
        %v586 = vld [vmem:[%s473 + $0x2] sm:$0x1]
        %v587 = vld [vmem:[%s473 + $0x3] sm:$0x1]
        %v592 = vlaneseq
        %v593 = vshrl.u32 %v592, 7
        %v594 = vsub.s32 0, %v593
        %v595 = vrot.slane %v584, %v594
        %v596 = vlaneseq
        %v597 = vshrl.u32 %v596, 7
        %v598 = vsub.s32 0, %v597
        %v599 = vrot.slane %v585, %v598
        %v600 = vlaneseq
        %v601 = vshrl.u32 %v600, 7
        %v602 = vsub.s32 0, %v601
        %v603 = vrot.slane %v586, %v602
        %v604 = vlaneseq
        %v605 = vshrl.u32 %v604, 7
        %v606 = vsub.s32 0, %v605
        %v607 = vrot.slane %v587, %v606
        %v612 = vsel %vm582, 1, 0
        %vm613 = vcmp.eq.s32.totalorder %v612, 1
        %v614 = vsel %vm613, %v595, 0.0
        %v615 = vsel %vm613, %v599, 0.0
        %v616 = vsel %vm613, %v603, 0.0
        %v617 = vsel %vm613, %v607, 0.0
        %v618 = vsel %vm581, 1, 0
        %vm619 = vcmp.eq.s32.totalorder %v618, 1
        %v620 = vsel %vm619, %v583, %v614
        %v621 = vsel %vm619, %v583, %v615
        %v622 = vsel %vm619, %v583, %v616
        %v623 = vsel %vm619, %v583, %v617
        %v624 = vadd.s32 %v580, 8
        %v625 = vadd.s32 %v580, 16
        %v626 = vadd.s32 %v580, 24
        %vm627 = vcmp.lt.s32.totalorder %v580, 0
        %v628 = vsub.s32 0, %v580
        %v629 = vsel %vm627, %v628, %v580
        %v630 = vshrl.u32 %v629, 3
        %v631 = vand.u32 %v629, 7
        %v632 = vsub.s32 0, %v631
        %v633 = vsel %vm627, %v632, %v631
        %vm634 = vcmp.lt.s32.totalorder %v624, 0
        %v635 = vsub.s32 0, %v624
        %v636 = vsel %vm634, %v635, %v624
        %v637 = vshrl.u32 %v636, 3
        %v638 = vand.u32 %v636, 7
        %v639 = vsub.s32 0, %v638
        %v640 = vsel %vm634, %v639, %v638
        %vm641 = vcmp.lt.s32.totalorder %v625, 0
        %v642 = vsub.s32 0, %v625
        %v643 = vsel %vm641, %v642, %v625
        %v644 = vshrl.u32 %v643, 3
        %v645 = vand.u32 %v643, 7
        %v646 = vsub.s32 0, %v645
        %v647 = vsel %vm641, %v646, %v645
        %vm648 = vcmp.lt.s32.totalorder %v626, 0
        %v649 = vsub.s32 0, %v626
        %v650 = vsel %vm648, %v649, %v626
        %v651 = vshrl.u32 %v650, 3
        %v652 = vand.u32 %v650, 7
        %v653 = vsub.s32 0, %v652
        %v654 = vsel %vm648, %v653, %v652
        %vm655 = vcmp.ne.s32.totalorder %v633, 0
        %vm656 = vcmp.ne.s32.totalorder %v640, 0
        %vm657 = vcmp.ne.s32.totalorder %v647, 0
        %vm658 = vcmp.ne.s32.totalorder %v654, 0
        %vm659 = vcmp.lt.s32.totalorder %v633, 0
        %vm660 = vcmp.lt.s32.totalorder %v640, 0
        %vm661 = vcmp.lt.s32.totalorder %v647, 0
        %vm662 = vcmp.lt.s32.totalorder %v654, 0
        %vm663 = vmand %vm659, %vm655
        %vm664 = vmand %vm660, %vm656
        %vm665 = vmand %vm661, %vm657
        %vm666 = vmand %vm662, %vm658
        %v667 = vadd.s32 %v633, 8
        %v668 = vadd.s32 %v640, 8
        %v669 = vadd.s32 %v647, 8
        %v670 = vadd.s32 %v654, 8
        %v671 = vsel %vm663, %v667, %v633
        %v672 = vsel %vm664, %v668, %v640
        %v673 = vsel %vm665, %v669, %v647
        %v674 = vsel %vm666, %v670, %v654
        %vm675 = vcmp.lt.s32.totalorder %v671, 6
        %vm676 = vcmp.lt.s32.totalorder %v672, 6
        %vm677 = vcmp.lt.s32.totalorder %v673, 6
        %vm678 = vcmp.lt.s32.totalorder %v674, 6
        %v679 = vld [vmem:[#allocation4] sm:$0xff]
        %v680 = vld [vmem:[#allocation4 + $0x8] sm:$0xff]
        %v681 = vld [vmem:[#allocation4 + $0x10] sm:$0xff]
        %v682 = vld [vmem:[#allocation4 + $0x18] sm:$0xff]
        %v683 = vld [vmem:[#allocation6] sm:$0x1]
        %v685 = vlaneseq
        %v686 = vshrl.u32 %v685, 7
        %v687 = vsub.s32 0, %v686
        %v688 = vrot.slane %v683, %v687
        %vm690 = vcmask 261120
        %v692 = vsel %vm690, %v620, 0
        %v695 = vsel %vm690, %v621, 0
        %v698 = vsel %vm690, %v622, 0
        %v701 = vsel %vm690, %v623, 0
        %703 = vmatprep.subr.mxu0 0.0
        %704 = vmatpush1.msra.mxu0 %v679
        %705 = vmatprep.subr.mxu0 0.0
        %706 = vmatpush1.msra.mxu0 %v680
        %707 = vmatprep.subr.mxu0 0.0
        %708 = vmatpush1.msra.mxu0 %v681
        %709 = vmatprep.subr.mxu0 0.0
        %710 = vmatpush1.msra.mxu0 %v682
        %711 = vmatprep.subr.mxu0 0.0
        %712 = vmatpush1.msra.mxu0 0.0
        %713 = vmatprep.subr.mxu0 0.0
        %714 = vmatpush1.msra.mxu0 0.0
        %715 = vmatprep.subr.mxu0 0.0
        %716 = vmatpush1.msra.mxu0 0.0
        %717 = vmatprep.subr.mxu0 0.0
        %718 = vmatpush1.msra.mxu0 0.0
        %719 = vmatprep.subr.mxu0 0.0
        %720 = vmatpush1.msra.mxu0 0.0
        %721 = vmatprep.subr.mxu0 0.0
        %722 = vmatpush1.msra.mxu0 0.0
        %723 = vmatprep.subr.mxu0 0.0
        %724 = vmatpush1.msra.mxu0 0.0
        %725 = vmatprep.subr.mxu0 0.0
        %726 = vmatpush1.msra.mxu0 0.0
        %727 = vmatprep.subr.mxu0 0.0
        %728 = vmatpush1.msra.mxu0 0.0
        %729 = vmatprep.subr.mxu0 0.0
        %730 = vmatpush1.msra.mxu0 0.0
        %731 = vmatprep.subr.mxu0 0.0
        %732 = vmatpush1.msra.mxu0 0.0
        %733 = vmatprep.subr.mxu0 0.0
        %734 = vmatpush1.msra.mxu0 0.0
        %735 = vmatprep.subr.mxu0 0.0
        %736 = vmatpush1.msra.mxu0 0.0
        %737 = vmatprep.subr.mxu0 0.0
        %738 = vmatpush1.msra.mxu0 0.0
        %739 = vmatprep.subr.mxu0 0.0
        %740 = vmatpush1.msra.mxu0 0.0
        %741 = vmatprep.subr.mxu0 0.0
        %742 = vmatpush1.msra.mxu0 0.0
        %743 = vmatprep.subr.mxu0 0.0
        %744 = vmatpush1.msra.mxu0 0.0
        %745 = vmatprep.subr.mxu0 0.0
        %746 = vmatpush1.msra.mxu0 0.0
        %747 = vmatprep.subr.mxu0 0.0
        %748 = vmatpush1.msra.mxu0 0.0
        %749 = vmatprep.subr.mxu0 0.0
        %750 = vmatpush1.msra.mxu0 0.0
        %751 = vmatprep.subr.mxu0 0.0
        %752 = vmatpush1.msra.mxu0 0.0
        %753 = vmatprep.subr.mxu0 0.0
        %754 = vmatpush1.msra.mxu0 0.0
        %755 = vmatprep.subr.mxu0 0.0
        %756 = vmatpush1.msra.mxu0 0.0
        %757 = vmatprep.subr.mxu0 0.0
        %758 = vmatpush1.msra.mxu0 0.0
        %759 = vmatprep.subr.mxu0 0.0
        %760 = vmatpush1.msra.mxu0 0.0
        %761 = vmatprep.subr.mxu0 0.0
        %762 = vmatpush1.msra.mxu0 0.0
        %763 = vmatprep.subr.mxu0 0.0
        %764 = vmatpush1.msra.mxu0 0.0
        %765 = vmatprep.subr.mxu0 0.0
        %766 = vmatpush1.msra.mxu0 0.0
        %767 = vmatprep.mubr.f32.mxu0 0.0
        %768 = vmatmul.mubr.f32.gmra.mrb[0].mxu0 %v692
        %v769 = vpop.f32.mrb[0].mxu0
        %v770 = vadd.f32 %v688, %v769
        %v771 = vpop.f32.mrb[0].mxu0
        %772 = vmatprep.mubr.f32.mxu0 0.0
        %773 = vmatmul.mubr.f32.gmra.mrb[0].mxu0 %v695
        %v774 = vpop.f32.mrb[0].mxu0
        %v775 = vadd.f32 %v688, %v774
        %v776 = vpop.f32.mrb[0].mxu0
        %777 = vmatprep.mubr.f32.mxu0 0.0
        %778 = vmatmul.mubr.f32.gmra.mrb[0].mxu0 %v698
        %v779 = vpop.f32.mrb[0].mxu0
        %v780 = vadd.f32 %v688, %v779
        %v781 = vpop.f32.mrb[0].mxu0
        %782 = vmatprep.mubr.f32.mxu0 0.0
        %783 = vmatmul.mubr.f32.gmra.mrb[0].mxu0 %v701
        %v784 = vpop.f32.mrb[0].mxu0
        %v785 = vadd.f32 %v688, %v784
        %v786 = vpop.f32.mrb[0].mxu0
        %787 = vdwg.mxu0
        %v788 = vmax.f32 %v770, 0.0
        %v789 = vmax.f32 %v775, 0.0
        %v790 = vmax.f32 %v780, 0.0
        %v791 = vmax.f32 %v785, 0.0
        %v792 = vsel %vm675, 1, 0
        %v793 = vsel %vm676, 1, 0
        %v794 = vsel %vm677, 1, 0
        %v795 = vsel %vm678, 1, 0
        %vm796 = vcmp.eq.s32.totalorder %v792, 1
        %vm797 = vcmp.eq.s32.totalorder %v793, 1
        %vm798 = vcmp.eq.s32.totalorder %v794, 1
        %vm799 = vcmp.eq.s32.totalorder %v795, 1
        %804 = vrot.lane.b32.xlu0 %v788, 96
        %v805 = vpop.permute.xlu0 %804
        %806 = vrot.lane.b32.xlu0 %v789, 96
        %v807 = vpop.permute.xlu0 %806
        %808 = vrot.lane.b32.xlu0 %v790, 96
        %v809 = vpop.permute.xlu0 %808
        %810 = vrot.lane.b32.xlu0 %v791, 96
        %v811 = vpop.permute.xlu0 %810
        %v816 = vsel %vm796, %v788, %v805
        %v817 = vsel %vm797, %v789, %v807
        %v818 = vsel %vm798, %v790, %v809
        %v819 = vsel %vm799, %v791, %v811
        %v820 = vld [vmem:[#allocation7] sm:$0xff]
        %v821 = vld [vmem:[#allocation7 + $0x8] sm:$0xff]
        %v822 = vld [vmem:[#allocation7 + $0x10] sm:$0xff]
        %v823 = vld [vmem:[#allocation7 + $0x18] sm:$0xff]
        %v824 = vld [vmem:[#allocation9] sm:$0x1]
        %v826 = vlaneseq
        %v827 = vshrl.u32 %v826, 7
        %v828 = vsub.s32 0, %v827
        %v829 = vrot.slane %v824, %v828
        %v832 = vsel %vm690, %v816, 0
        %v835 = vsel %vm690, %v817, 0
        %v838 = vsel %vm690, %v818, 0
        %v841 = vsel %vm690, %v819, 0
        %843 = vmatprep.subr.mxu0 0.0
        %844 = vmatpush1.msra.mxu0 %v820
        %845 = vmatprep.subr.mxu0 0.0
        %846 = vmatpush1.msra.mxu0 %v821
        %847 = vmatprep.subr.mxu0 0.0
        %848 = vmatpush1.msra.mxu0 %v822
        %849 = vmatprep.subr.mxu0 0.0
        %850 = vmatpush1.msra.mxu0 %v823
        %851 = vmatprep.subr.mxu0 0.0
        %852 = vmatpush1.msra.mxu0 0.0
        %853 = vmatprep.subr.mxu0 0.0
        %854 = vmatpush1.msra.mxu0 0.0
        %855 = vmatprep.subr.mxu0 0.0
        %856 = vmatpush1.msra.mxu0 0.0
        %857 = vmatprep.subr.mxu0 0.0
        %858 = vmatpush1.msra.mxu0 0.0
        %859 = vmatprep.subr.mxu0 0.0
        %860 = vmatpush1.msra.mxu0 0.0
        %861 = vmatprep.subr.mxu0 0.0
        %862 = vmatpush1.msra.mxu0 0.0
        %863 = vmatprep.subr.mxu0 0.0
        %864 = vmatpush1.msra.mxu0 0.0
        %865 = vmatprep.subr.mxu0 0.0
        %866 = vmatpush1.msra.mxu0 0.0
        %867 = vmatprep.subr.mxu0 0.0
        %868 = vmatpush1.msra.mxu0 0.0
        %869 = vmatprep.subr.mxu0 0.0
        %870 = vmatpush1.msra.mxu0 0.0
        %871 = vmatprep.subr.mxu0 0.0
        %872 = vmatpush1.msra.mxu0 0.0
        %873 = vmatprep.subr.mxu0 0.0
        %874 = vmatpush1.msra.mxu0 0.0
        %875 = vmatprep.subr.mxu0 0.0
        %876 = vmatpush1.msra.mxu0 0.0
        %877 = vmatprep.subr.mxu0 0.0
        %878 = vmatpush1.msra.mxu0 0.0
        %879 = vmatprep.subr.mxu0 0.0
        %880 = vmatpush1.msra.mxu0 0.0
        %881 = vmatprep.subr.mxu0 0.0
        %882 = vmatpush1.msra.mxu0 0.0
        %883 = vmatprep.subr.mxu0 0.0
        %884 = vmatpush1.msra.mxu0 0.0
        %885 = vmatprep.subr.mxu0 0.0
        %886 = vmatpush1.msra.mxu0 0.0
        %887 = vmatprep.subr.mxu0 0.0
        %888 = vmatpush1.msra.mxu0 0.0
        %889 = vmatprep.subr.mxu0 0.0
        %890 = vmatpush1.msra.mxu0 0.0
        %891 = vmatprep.subr.mxu0 0.0
        %892 = vmatpush1.msra.mxu0 0.0
        %893 = vmatprep.subr.mxu0 0.0
        %894 = vmatpush1.msra.mxu0 0.0
        %895 = vmatprep.subr.mxu0 0.0
        %896 = vmatpush1.msra.mxu0 0.0
        %897 = vmatprep.subr.mxu0 0.0
        %898 = vmatpush1.msra.mxu0 0.0
        %899 = vmatprep.subr.mxu0 0.0
        %900 = vmatpush1.msra.mxu0 0.0
        %901 = vmatprep.subr.mxu0 0.0
        %902 = vmatpush1.msra.mxu0 0.0
        %903 = vmatprep.subr.mxu0 0.0
        %904 = vmatpush1.msra.mxu0 0.0
        %905 = vmatprep.subr.mxu0 0.0
        %906 = vmatpush1.msra.mxu0 0.0
        %907 = vmatprep.mubr.f32.mxu0 0.0
        %908 = vmatmul.mubr.f32.gmra.mrb[0].mxu0 %v832
        %v909 = vpop.f32.mrb[0].mxu0
        %v910 = vadd.f32 %v829, %v909
        %v911 = vpop.f32.mrb[0].mxu0
        %912 = vmatprep.mubr.f32.mxu0 0.0
        %913 = vmatmul.mubr.f32.gmra.mrb[0].mxu0 %v835
        %v914 = vpop.f32.mrb[0].mxu0
        %v915 = vadd.f32 %v829, %v914
        %v916 = vpop.f32.mrb[0].mxu0
        %917 = vmatprep.mubr.f32.mxu0 0.0
        %918 = vmatmul.mubr.f32.gmra.mrb[0].mxu0 %v838
        %v919 = vpop.f32.mrb[0].mxu0
        %v920 = vadd.f32 %v829, %v919
        %v921 = vpop.f32.mrb[0].mxu0
        %922 = vmatprep.mubr.f32.mxu0 0.0
        %923 = vmatmul.mubr.f32.gmra.mrb[0].mxu0 %v841
        %v924 = vpop.f32.mrb[0].mxu0
        %v925 = vadd.f32 %v829, %v924
        %v926 = vpop.f32.mrb[0].mxu0
        %927 = vdwg.mxu0
        %v928 = vlaneseq
        %v929 = vshrl.u32 %v928, 7
        %v930 = vsub.s32 6, %v929
        %v931 = vrot.slane %v910, %v930
        %v932 = vlaneseq
        %v933 = vshrl.u32 %v932, 7
        %v934 = vsub.s32 6, %v933
        %v935 = vrot.slane %v915, %v934
        %v936 = vlaneseq
        %v937 = vshrl.u32 %v936, 7
        %v938 = vsub.s32 6, %v937
        %v939 = vrot.slane %v920, %v938
        %v940 = vlaneseq
        %v941 = vshrl.u32 %v940, 7
        %v942 = vsub.s32 6, %v941
        %v943 = vrot.slane %v925, %v942
        %948 = vrot.lane.b32.xlu0 %v931, 96
        %v949 = vpop.permute.xlu0 %948
        %950 = vrot.lane.b32.xlu0 %v935, 96
        %v951 = vpop.permute.xlu0 %950
        %952 = vrot.lane.b32.xlu0 %v939, 96
        %v953 = vpop.permute.xlu0 %952
        %954 = vrot.lane.b32.xlu0 %v943, 96
        %v955 = vpop.permute.xlu0 %954
        %v960 = vmul.f32 %v910, %v949
        %v961 = vmul.f32 %v915, %v951
        %v962 = vmul.f32 %v920, %v953
        %v963 = vmul.f32 %v925, %v955
        %v964 = vsel %vm619, %v960, -inf
        %v965 = vsel %vm619, %v961, -inf
        %v966 = vsel %vm619, %v962, -inf
        %v967 = vsel %vm619, %v963, -inf
        %v968 = vsel %vm690, %v964, -inf
        %v969 = vrot.slane %v968, 4
        %v970 = vmax.f32 %v968, %v969
        %v971 = vrot.slane %v970, 2
        %v972 = vmax.f32 %v970, %v971
        %v973 = vrot.slane %v972, 1
        %v974 = vmax.f32 %v972, %v973
        %v975 = vsel %vm690, %v965, -inf
        %v976 = vrot.slane %v975, 4
        %v977 = vmax.f32 %v975, %v976
        %v978 = vrot.slane %v977, 2
        %v979 = vmax.f32 %v977, %v978
        %v980 = vrot.slane %v979, 1
        %v981 = vmax.f32 %v979, %v980
        %v982 = vsel %vm690, %v966, -inf
        %v983 = vrot.slane %v982, 4
        %v984 = vmax.f32 %v982, %v983
        %v985 = vrot.slane %v984, 2
        %v986 = vmax.f32 %v984, %v985
        %v987 = vrot.slane %v986, 1
        %v988 = vmax.f32 %v986, %v987
        %v989 = vsel %vm690, %v967, -inf
        %v990 = vrot.slane %v989, 4
        %v991 = vmax.f32 %v989, %v990
        %v992 = vrot.slane %v991, 2
        %v993 = vmax.f32 %v991, %v992
        %v994 = vrot.slane %v993, 1
        %v995 = vmax.f32 %v993, %v994
        %v996 = vsel %vm613, %v974, 0.0
        %v997 = vsel %vm613, %v981, 0.0
        %v998 = vsel %vm613, %v988, 0.0
        %v999 = vsel %vm613, %v995, 0.0
        %v1000 = vsel %vm619, %v960, %v996
        %v1001 = vsel %vm619, %v961, %v997
        %v1002 = vsel %vm619, %v962, %v998
        %v1003 = vsel %vm619, %v963, %v999
        %v1004 = vmul.f32 %v620, 0.5
        %v1005 = vmul.f32 %v621, 0.5
        %v1006 = vmul.f32 %v622, 0.5
        %v1007 = vmul.f32 %v623, 0.5
        %v1008 = vmul.f32 %v1000, 0.5
        %v1009 = vmul.f32 %v1001, 0.5
        %v1010 = vmul.f32 %v1002, 0.5
        %v1011 = vmul.f32 %v1003, 0.5
        %v1012 = vadd.f32 %v1004, %v1008
        %v1013 = vadd.f32 %v1005, %v1009
        %v1014 = vadd.f32 %v1006, %v1010
        %v1015 = vadd.f32 %v1007, %v1011
        %s1016 = scalar_lea.vmem [#allocation4], 32
        %v1017 = vld [vmem:[%s1016] sm:$0xff]
        %v1018 = vld [vmem:[%s1016 + $0x8] sm:$0xff]
        %v1019 = vld [vmem:[%s1016 + $0x10] sm:$0xff]
        %v1020 = vld [vmem:[%s1016 + $0x18] sm:$0xff]
        %s1021 = scalar_lea.vmem [#allocation6], 1
        %v1022 = vld [vmem:[%s1021] sm:$0x1]
        %v1024 = vlaneseq
        %v1025 = vshrl.u32 %v1024, 7
        %v1026 = vsub.s32 0, %v1025
        %v1027 = vrot.slane %v1022, %v1026
        %v1030 = vsel %vm690, %v1012, 0
        %v1033 = vsel %vm690, %v1013, 0
        %v1036 = vsel %vm690, %v1014, 0
        %v1039 = vsel %vm690, %v1015, 0
        %1041 = vmatprep.subr.mxu0 0.0
        %1042 = vmatpush1.msra.mxu0 %v1017
        %1043 = vmatprep.subr.mxu0 0.0
        %1044 = vmatpush1.msra.mxu0 %v1018
        %1045 = vmatprep.subr.mxu0 0.0
        %1046 = vmatpush1.msra.mxu0 %v1019
        %1047 = vmatprep.subr.mxu0 0.0
        %1048 = vmatpush1.msra.mxu0 %v1020
        %1049 = vmatprep.subr.mxu0 0.0
        %1050 = vmatpush1.msra.mxu0 0.0
        %1051 = vmatprep.subr.mxu0 0.0
        %1052 = vmatpush1.msra.mxu0 0.0
        %1053 = vmatprep.subr.mxu0 0.0
        %1054 = vmatpush1.msra.mxu0 0.0
        %1055 = vmatprep.subr.mxu0 0.0
        %1056 = vmatpush1.msra.mxu0 0.0
        %1057 = vmatprep.subr.mxu0 0.0
        %1058 = vmatpush1.msra.mxu0 0.0
        %1059 = vmatprep.subr.mxu0 0.0
        %1060 = vmatpush1.msra.mxu0 0.0
        %1061 = vmatprep.subr.mxu0 0.0
        %1062 = vmatpush1.msra.mxu0 0.0
        %1063 = vmatprep.subr.mxu0 0.0
        %1064 = vmatpush1.msra.mxu0 0.0
        %1065 = vmatprep.subr.mxu0 0.0
        %1066 = vmatpush1.msra.mxu0 0.0
        %1067 = vmatprep.subr.mxu0 0.0
        %1068 = vmatpush1.msra.mxu0 0.0
        %1069 = vmatprep.subr.mxu0 0.0
        %1070 = vmatpush1.msra.mxu0 0.0
        %1071 = vmatprep.subr.mxu0 0.0
        %1072 = vmatpush1.msra.mxu0 0.0
        %1073 = vmatprep.subr.mxu0 0.0
        %1074 = vmatpush1.msra.mxu0 0.0
        %1075 = vmatprep.subr.mxu0 0.0
        %1076 = vmatpush1.msra.mxu0 0.0
        %1077 = vmatprep.subr.mxu0 0.0
        %1078 = vmatpush1.msra.mxu0 0.0
        %1079 = vmatprep.subr.mxu0 0.0
        %1080 = vmatpush1.msra.mxu0 0.0
        %1081 = vmatprep.subr.mxu0 0.0
        %1082 = vmatpush1.msra.mxu0 0.0
        %1083 = vmatprep.subr.mxu0 0.0
        %1084 = vmatpush1.msra.mxu0 0.0
        %1085 = vmatprep.subr.mxu0 0.0
        %1086 = vmatpush1.msra.mxu0 0.0
        %1087 = vmatprep.subr.mxu0 0.0
        %1088 = vmatpush1.msra.mxu0 0.0
        %1089 = vmatprep.subr.mxu0 0.0
        %1090 = vmatpush1.msra.mxu0 0.0
        %1091 = vmatprep.subr.mxu0 0.0
        %1092 = vmatpush1.msra.mxu0 0.0
        %1093 = vmatprep.subr.mxu0 0.0
        %1094 = vmatpush1.msra.mxu0 0.0
        %1095 = vmatprep.subr.mxu0 0.0
        %1096 = vmatpush1.msra.mxu0 0.0
        %1097 = vmatprep.subr.mxu0 0.0
        %1098 = vmatpush1.msra.mxu0 0.0
        %1099 = vmatprep.subr.mxu0 0.0
        %1100 = vmatpush1.msra.mxu0 0.0
        %1101 = vmatprep.subr.mxu0 0.0
        %1102 = vmatpush1.msra.mxu0 0.0
        %1103 = vmatprep.subr.mxu0 0.0
        %1104 = vmatpush1.msra.mxu0 0.0
        %1105 = vmatprep.mubr.f32.mxu0 0.0
        %1106 = vmatmul.mubr.f32.gmra.mrb[0].mxu0 %v1030
        %v1107 = vpop.f32.mrb[0].mxu0
        %v1108 = vadd.f32 %v1027, %v1107
        %v1109 = vpop.f32.mrb[0].mxu0
        %1110 = vmatprep.mubr.f32.mxu0 0.0
        %1111 = vmatmul.mubr.f32.gmra.mrb[0].mxu0 %v1033
        %v1112 = vpop.f32.mrb[0].mxu0
        %v1113 = vadd.f32 %v1027, %v1112
        %v1114 = vpop.f32.mrb[0].mxu0
        %1115 = vmatprep.mubr.f32.mxu0 0.0
        %1116 = vmatmul.mubr.f32.gmra.mrb[0].mxu0 %v1036
        %v1117 = vpop.f32.mrb[0].mxu0
        %v1118 = vadd.f32 %v1027, %v1117
        %v1119 = vpop.f32.mrb[0].mxu0
        %1120 = vmatprep.mubr.f32.mxu0 0.0
        %1121 = vmatmul.mubr.f32.gmra.mrb[0].mxu0 %v1039
        %v1122 = vpop.f32.mrb[0].mxu0
        %v1123 = vadd.f32 %v1027, %v1122
        %v1124 = vpop.f32.mrb[0].mxu0
        %1125 = vdwg.mxu0
        %v1126 = vmax.f32 %v1108, 0.0
        %v1127 = vmax.f32 %v1113, 0.0
        %v1128 = vmax.f32 %v1118, 0.0
        %v1129 = vmax.f32 %v1123, 0.0
        %1134 = vrot.lane.b32.xlu0 %v1126, 96
        %v1135 = vpop.permute.xlu0 %1134
        %1136 = vrot.lane.b32.xlu0 %v1127, 96
        %v1137 = vpop.permute.xlu0 %1136
        %1138 = vrot.lane.b32.xlu0 %v1128, 96
        %v1139 = vpop.permute.xlu0 %1138
        %1140 = vrot.lane.b32.xlu0 %v1129, 96
        %v1141 = vpop.permute.xlu0 %1140
        %v1146 = vsel %vm796, %v1126, %v1135
        %v1147 = vsel %vm797, %v1127, %v1137
        %v1148 = vsel %vm798, %v1128, %v1139
        %v1149 = vsel %vm799, %v1129, %v1141
        %s1150 = scalar_lea.vmem [#allocation7], 32
        %v1151 = vld [vmem:[%s1150] sm:$0xff]
        %v1152 = vld [vmem:[%s1150 + $0x8] sm:$0xff]
        %v1153 = vld [vmem:[%s1150 + $0x10] sm:$0xff]
        %v1154 = vld [vmem:[%s1150 + $0x18] sm:$0xff]
        %s1155 = scalar_lea.vmem [#allocation9], 1
        %v1156 = vld [vmem:[%s1155] sm:$0x1]
        %v1158 = vlaneseq
        %v1159 = vshrl.u32 %v1158, 7
        %v1160 = vsub.s32 0, %v1159
        %v1161 = vrot.slane %v1156, %v1160
        %v1164 = vsel %vm690, %v1146, 0
        %v1167 = vsel %vm690, %v1147, 0
        %v1170 = vsel %vm690, %v1148, 0
        %v1173 = vsel %vm690, %v1149, 0
        %1175 = vmatprep.subr.mxu0 0.0
        %1176 = vmatpush1.msra.mxu0 %v1151
        %1177 = vmatprep.subr.mxu0 0.0
        %1178 = vmatpush1.msra.mxu0 %v1152
        %1179 = vmatprep.subr.mxu0 0.0
        %1180 = vmatpush1.msra.mxu0 %v1153
        %1181 = vmatprep.subr.mxu0 0.0
        %1182 = vmatpush1.msra.mxu0 %v1154
        %1183 = vmatprep.subr.mxu0 0.0
        %1184 = vmatpush1.msra.mxu0 0.0
        %1185 = vmatprep.subr.mxu0 0.0
        %1186 = vmatpush1.msra.mxu0 0.0
        %1187 = vmatprep.subr.mxu0 0.0
        %1188 = vmatpush1.msra.mxu0 0.0
        %1189 = vmatprep.subr.mxu0 0.0
        %1190 = vmatpush1.msra.mxu0 0.0
        %1191 = vmatprep.subr.mxu0 0.0
        %1192 = vmatpush1.msra.mxu0 0.0
        %1193 = vmatprep.subr.mxu0 0.0
        %1194 = vmatpush1.msra.mxu0 0.0
        %1195 = vmatprep.subr.mxu0 0.0
        %1196 = vmatpush1.msra.mxu0 0.0
        %1197 = vmatprep.subr.mxu0 0.0
        %1198 = vmatpush1.msra.mxu0 0.0
        %1199 = vmatprep.subr.mxu0 0.0
        %1200 = vmatpush1.msra.mxu0 0.0
        %1201 = vmatprep.subr.mxu0 0.0
        %1202 = vmatpush1.msra.mxu0 0.0
        %1203 = vmatprep.subr.mxu0 0.0
        %1204 = vmatpush1.msra.mxu0 0.0
        %1205 = vmatprep.subr.mxu0 0.0
        %1206 = vmatpush1.msra.mxu0 0.0
        %1207 = vmatprep.subr.mxu0 0.0
        %1208 = vmatpush1.msra.mxu0 0.0
        %1209 = vmatprep.subr.mxu0 0.0
        %1210 = vmatpush1.msra.mxu0 0.0
        %1211 = vmatprep.subr.mxu0 0.0
        %1212 = vmatpush1.msra.mxu0 0.0
        %1213 = vmatprep.subr.mxu0 0.0
        %1214 = vmatpush1.msra.mxu0 0.0
        %1215 = vmatprep.subr.mxu0 0.0
        %1216 = vmatpush1.msra.mxu0 0.0
        %1217 = vmatprep.subr.mxu0 0.0
        %1218 = vmatpush1.msra.mxu0 0.0
        %1219 = vmatprep.subr.mxu0 0.0
        %1220 = vmatpush1.msra.mxu0 0.0
        %1221 = vmatprep.subr.mxu0 0.0
        %1222 = vmatpush1.msra.mxu0 0.0
        %1223 = vmatprep.subr.mxu0 0.0
        %1224 = vmatpush1.msra.mxu0 0.0
        %1225 = vmatprep.subr.mxu0 0.0
        %1226 = vmatpush1.msra.mxu0 0.0
        %1227 = vmatprep.subr.mxu0 0.0
        %1228 = vmatpush1.msra.mxu0 0.0
        %1229 = vmatprep.subr.mxu0 0.0
        %1230 = vmatpush1.msra.mxu0 0.0
        %1231 = vmatprep.subr.mxu0 0.0
        %1232 = vmatpush1.msra.mxu0 0.0
        %1233 = vmatprep.subr.mxu0 0.0
        %1234 = vmatpush1.msra.mxu0 0.0
        %1235 = vmatprep.subr.mxu0 0.0
        %1236 = vmatpush1.msra.mxu0 0.0
        %1237 = vmatprep.subr.mxu0 0.0
        %1238 = vmatpush1.msra.mxu0 0.0
        %1239 = vmatprep.mubr.f32.mxu0 0.0
        %1240 = vmatmul.mubr.f32.gmra.mrb[0].mxu0 %v1164
        %v1241 = vpop.f32.mrb[0].mxu0
        %v1242 = vadd.f32 %v1161, %v1241
        %v1243 = vpop.f32.mrb[0].mxu0
        %1244 = vmatprep.mubr.f32.mxu0 0.0
        %1245 = vmatmul.mubr.f32.gmra.mrb[0].mxu0 %v1167
        %v1246 = vpop.f32.mrb[0].mxu0
        %v1247 = vadd.f32 %v1161, %v1246
        %v1248 = vpop.f32.mrb[0].mxu0
        %1249 = vmatprep.mubr.f32.mxu0 0.0
        %1250 = vmatmul.mubr.f32.gmra.mrb[0].mxu0 %v1170
        %v1251 = vpop.f32.mrb[0].mxu0
        %v1252 = vadd.f32 %v1161, %v1251
        %v1253 = vpop.f32.mrb[0].mxu0
        %1254 = vmatprep.mubr.f32.mxu0 0.0
        %1255 = vmatmul.mubr.f32.gmra.mrb[0].mxu0 %v1173
        %v1256 = vpop.f32.mrb[0].mxu0
        %v1257 = vadd.f32 %v1161, %v1256
        %v1258 = vpop.f32.mrb[0].mxu0
        %1259 = vdwg.mxu0
        %v1260 = vlaneseq
        %v1261 = vshrl.u32 %v1260, 7
        %v1262 = vsub.s32 6, %v1261
        %v1263 = vrot.slane %v1242, %v1262
        %v1264 = vlaneseq
        %v1265 = vshrl.u32 %v1264, 7
        %v1266 = vsub.s32 6, %v1265
        %v1267 = vrot.slane %v1247, %v1266
        %v1268 = vlaneseq
        %v1269 = vshrl.u32 %v1268, 7
        %v1270 = vsub.s32 6, %v1269
        %v1271 = vrot.slane %v1252, %v1270
        %v1272 = vlaneseq
        %v1273 = vshrl.u32 %v1272, 7
        %v1274 = vsub.s32 6, %v1273
        %v1275 = vrot.slane %v1257, %v1274
        %1280 = vrot.lane.b32.xlu0 %v1263, 96
        %v1281 = vpop.permute.xlu0 %1280
        %1282 = vrot.lane.b32.xlu0 %v1267, 96
        %v1283 = vpop.permute.xlu0 %1282
        %1284 = vrot.lane.b32.xlu0 %v1271, 96
        %v1285 = vpop.permute.xlu0 %1284
        %1286 = vrot.lane.b32.xlu0 %v1275, 96
        %v1287 = vpop.permute.xlu0 %1286
        %v1292 = vmul.f32 %v1242, %v1281
        %v1293 = vmul.f32 %v1247, %v1283
        %v1294 = vmul.f32 %v1252, %v1285
        %v1295 = vmul.f32 %v1257, %v1287
        %v1296 = vsel %vm619, %v1292, -inf
        %v1297 = vsel %vm619, %v1293, -inf
        %v1298 = vsel %vm619, %v1294, -inf
        %v1299 = vsel %vm619, %v1295, -inf
        %v1300 = vsel %vm690, %v1296, -inf
        %v1301 = vrot.slane %v1300, 4
        %v1302 = vmax.f32 %v1300, %v1301
        %v1303 = vrot.slane %v1302, 2
        %v1304 = vmax.f32 %v1302, %v1303
        %v1305 = vrot.slane %v1304, 1
        %v1306 = vmax.f32 %v1304, %v1305
        %v1307 = vsel %vm690, %v1297, -inf
        %v1308 = vrot.slane %v1307, 4
        %v1309 = vmax.f32 %v1307, %v1308
        %v1310 = vrot.slane %v1309, 2
        %v1311 = vmax.f32 %v1309, %v1310
        %v1312 = vrot.slane %v1311, 1
        %v1313 = vmax.f32 %v1311, %v1312
        %v1314 = vsel %vm690, %v1298, -inf
        %v1315 = vrot.slane %v1314, 4
        %v1316 = vmax.f32 %v1314, %v1315
        %v1317 = vrot.slane %v1316, 2
        %v1318 = vmax.f32 %v1316, %v1317
        %v1319 = vrot.slane %v1318, 1
        %v1320 = vmax.f32 %v1318, %v1319
        %v1321 = vsel %vm690, %v1299, -inf
        %v1322 = vrot.slane %v1321, 4
        %v1323 = vmax.f32 %v1321, %v1322
        %v1324 = vrot.slane %v1323, 2
        %v1325 = vmax.f32 %v1323, %v1324
        %v1326 = vrot.slane %v1325, 1
        %v1327 = vmax.f32 %v1325, %v1326
        %v1328 = vsel %vm613, %v1306, 0.0
        %v1329 = vsel %vm613, %v1313, 0.0
        %v1330 = vsel %vm613, %v1320, 0.0
        %v1331 = vsel %vm613, %v1327, 0.0
        %v1332 = vsel %vm619, %v1292, %v1328
        %v1333 = vsel %vm619, %v1293, %v1329
        %v1334 = vsel %vm619, %v1294, %v1330
        %v1335 = vsel %vm619, %v1295, %v1331
        %v1336 = vmul.f32 %v1012, 0.5
        %v1337 = vmul.f32 %v1013, 0.5
        %v1338 = vmul.f32 %v1014, 0.5
        %v1339 = vmul.f32 %v1015, 0.5
        %v1340 = vmul.f32 %v1332, 0.5
        %v1341 = vmul.f32 %v1333, 0.5
        %v1342 = vmul.f32 %v1334, 0.5
        %v1343 = vmul.f32 %v1335, 0.5
        %v1344 = vadd.f32 %v1336, %v1340
        %v1345 = vadd.f32 %v1337, %v1341
        %v1346 = vadd.f32 %v1338, %v1342
        %v1347 = vadd.f32 %v1339, %v1343
        %v1348 = vld [vmem:[#allocation10] sm:$0xff]
        %v1349 = vld [vmem:[#allocation10 + $0x8] sm:$0xff]
        %v1350 = vld [vmem:[#allocation10 + $0x10] sm:$0xff]
        %v1351 = vld [vmem:[#allocation10 + $0x18] sm:$0xff]
        %v1352 = vld [vmem:[#allocation12] sm:$0x1]
        %v1354 = vlaneseq
        %v1355 = vshrl.u32 %v1354, 7
        %v1356 = vsub.s32 0, %v1355
        %v1357 = vrot.slane %v1352, %v1356
        %v1360 = vsel %vm690, %v1344, 0
        %v1363 = vsel %vm690, %v1345, 0
        %v1366 = vsel %vm690, %v1346, 0
        %v1369 = vsel %vm690, %v1347, 0
        %1371 = vmatprep.subr.mxu0 0.0
        %1372 = vmatpush1.msra.mxu0 %v1348
        %1373 = vmatprep.subr.mxu0 0.0
        %1374 = vmatpush1.msra.mxu0 %v1349
        %1375 = vmatprep.subr.mxu0 0.0
        %1376 = vmatpush1.msra.mxu0 %v1350
        %1377 = vmatprep.subr.mxu0 0.0
        %1378 = vmatpush1.msra.mxu0 %v1351
        %1379 = vmatprep.subr.mxu0 0.0
        %1380 = vmatpush1.msra.mxu0 0.0
        %1381 = vmatprep.subr.mxu0 0.0
        %1382 = vmatpush1.msra.mxu0 0.0
        %1383 = vmatprep.subr.mxu0 0.0
        %1384 = vmatpush1.msra.mxu0 0.0
        %1385 = vmatprep.subr.mxu0 0.0
        %1386 = vmatpush1.msra.mxu0 0.0
        %1387 = vmatprep.subr.mxu0 0.0
        %1388 = vmatpush1.msra.mxu0 0.0
        %1389 = vmatprep.subr.mxu0 0.0
        %1390 = vmatpush1.msra.mxu0 0.0
        %1391 = vmatprep.subr.mxu0 0.0
        %1392 = vmatpush1.msra.mxu0 0.0
        %1393 = vmatprep.subr.mxu0 0.0
        %1394 = vmatpush1.msra.mxu0 0.0
        %1395 = vmatprep.subr.mxu0 0.0
        %1396 = vmatpush1.msra.mxu0 0.0
        %1397 = vmatprep.subr.mxu0 0.0
        %1398 = vmatpush1.msra.mxu0 0.0
        %1399 = vmatprep.subr.mxu0 0.0
        %1400 = vmatpush1.msra.mxu0 0.0
        %1401 = vmatprep.subr.mxu0 0.0
        %1402 = vmatpush1.msra.mxu0 0.0
        %1403 = vmatprep.subr.mxu0 0.0
        %1404 = vmatpush1.msra.mxu0 0.0
        %1405 = vmatprep.subr.mxu0 0.0
        %1406 = vmatpush1.msra.mxu0 0.0
        %1407 = vmatprep.subr.mxu0 0.0
        %1408 = vmatpush1.msra.mxu0 0.0
        %1409 = vmatprep.subr.mxu0 0.0
        %1410 = vmatpush1.msra.mxu0 0.0
        %1411 = vmatprep.subr.mxu0 0.0
        %1412 = vmatpush1.msra.mxu0 0.0
        %1413 = vmatprep.subr.mxu0 0.0
        %1414 = vmatpush1.msra.mxu0 0.0
        %1415 = vmatprep.subr.mxu0 0.0
        %1416 = vmatpush1.msra.mxu0 0.0
        %1417 = vmatprep.subr.mxu0 0.0
        %1418 = vmatpush1.msra.mxu0 0.0
        %1419 = vmatprep.subr.mxu0 0.0
        %1420 = vmatpush1.msra.mxu0 0.0
        %1421 = vmatprep.subr.mxu0 0.0
        %1422 = vmatpush1.msra.mxu0 0.0
        %1423 = vmatprep.subr.mxu0 0.0
        %1424 = vmatpush1.msra.mxu0 0.0
        %1425 = vmatprep.subr.mxu0 0.0
        %1426 = vmatpush1.msra.mxu0 0.0
        %1427 = vmatprep.subr.mxu0 0.0
        %1428 = vmatpush1.msra.mxu0 0.0
        %1429 = vmatprep.subr.mxu0 0.0
        %1430 = vmatpush1.msra.mxu0 0.0
        %1431 = vmatprep.subr.mxu0 0.0
        %1432 = vmatpush1.msra.mxu0 0.0
        %1433 = vmatprep.subr.mxu0 0.0
        %1434 = vmatpush1.msra.mxu0 0.0
        %1435 = vmatprep.mubr.f32.mxu0 0.0
        %1436 = vmatmul.mubr.f32.gmra.mrb[0].mxu0 %v1360
        %v1437 = vpop.f32.mrb[0].mxu0
        %v1438 = vadd.f32 %v1357, %v1437
        %v1439 = vpop.f32.mrb[0].mxu0
        %1440 = vmatprep.mubr.f32.mxu0 0.0
        %1441 = vmatmul.mubr.f32.gmra.mrb[0].mxu0 %v1363
        %v1442 = vpop.f32.mrb[0].mxu0
        %v1443 = vadd.f32 %v1357, %v1442
        %v1444 = vpop.f32.mrb[0].mxu0
        %1445 = vmatprep.mubr.f32.mxu0 0.0
        %1446 = vmatmul.mubr.f32.gmra.mrb[0].mxu0 %v1366
        %v1447 = vpop.f32.mrb[0].mxu0
        %v1448 = vadd.f32 %v1357, %v1447
        %v1449 = vpop.f32.mrb[0].mxu0
        %1450 = vmatprep.mubr.f32.mxu0 0.0
        %1451 = vmatmul.mubr.f32.gmra.mrb[0].mxu0 %v1369
        %v1452 = vpop.f32.mrb[0].mxu0
        %v1453 = vadd.f32 %v1357, %v1452
        %v1454 = vpop.f32.mrb[0].mxu0
        %1455 = vdwg.mxu0
        %v1456 = vmax.f32 %v1438, 0.0
        %v1457 = vmax.f32 %v1443, 0.0
        %v1458 = vmax.f32 %v1448, 0.0
        %v1459 = vmax.f32 %v1453, 0.0
        %v1460 = vld [vmem:[#allocation13] sm:$0xff]
        %v1461 = vld [vmem:[#allocation13 + $0x8] sm:$0xff]
        %v1462 = vld [vmem:[#allocation13 + $0x10] sm:$0xff]
        %v1463 = vld [vmem:[#allocation13 + $0x18] sm:$0xff]
        %v1464 = vld [vmem:[#allocation13 + $0x20] sm:$0xff]
        %v1465 = vld [vmem:[#allocation13 + $0x28] sm:$0xff]
        %v1466 = vld [vmem:[#allocation13 + $0x30] sm:$0xff]
        %v1467 = vld [vmem:[#allocation13 + $0x38] sm:$0xff]
        %v1468 = vld [vmem:[#allocation13 + $0x40] sm:$0xff]
        %v1469 = vld [vmem:[#allocation13 + $0x48] sm:$0xff]
        %v1470 = vld [vmem:[#allocation13 + $0x50] sm:$0xff]
        %v1471 = vld [vmem:[#allocation13 + $0x58] sm:$0xff]
        %v1472 = vld [vmem:[#allocation13 + $0x60] sm:$0xff]
        %v1473 = vld [vmem:[#allocation13 + $0x68] sm:$0xff]
        %v1474 = vld [vmem:[#allocation13 + $0x70] sm:$0xff]
        %v1475 = vld [vmem:[#allocation13 + $0x78] sm:$0xff]
        %v1476 = vld [vmem:[#allocation13 + $0x80] sm:$0xff]
        %v1477 = vld [vmem:[#allocation13 + $0x88] sm:$0xff]
        %v1478 = vld [vmem:[#allocation13 + $0x90] sm:$0xff]
        %v1479 = vld [vmem:[#allocation13 + $0x98] sm:$0xff]
        %v1480 = vld [vmem:[#allocation13 + $0xa0] sm:$0xff]
        %v1481 = vld [vmem:[#allocation13 + $0xa8] sm:$0xff]
        %v1482 = vld [vmem:[#allocation13 + $0xb0] sm:$0xff]
        %v1483 = vld [vmem:[#allocation13 + $0xb8] sm:$0xff]
        %v1484 = vld [vmem:[#allocation13 + $0xc0] sm:$0xff]
        %v1485 = vld [vmem:[#allocation13 + $0xc8] sm:$0xff]
        %v1486 = vld [vmem:[#allocation13 + $0xd0] sm:$0xff]
        %v1487 = vld [vmem:[#allocation13 + $0xd8] sm:$0xff]
        %v1488 = vld [vmem:[#allocation13 + $0xe0] sm:$0xff]
        %v1489 = vld [vmem:[#allocation13 + $0xe8] sm:$0xff]
        %v1490 = vld [vmem:[#allocation13 + $0xf0] sm:$0xff]
        %v1491 = vld [vmem:[#allocation13 + $0xf8] sm:$0xff]
        %v1492 = vld [vmem:[#allocation13 + $0x100] sm:$0xff]
        %v1493 = vld [vmem:[#allocation13 + $0x108] sm:$0xff]
        %v1494 = vld [vmem:[#allocation13 + $0x110] sm:$0xff]
        %v1495 = vld [vmem:[#allocation13 + $0x118] sm:$0xff]
        %v1496 = vld [vmem:[#allocation13 + $0x120] sm:$0xff]
        %v1497 = vld [vmem:[#allocation13 + $0x128] sm:$0xff]
        %v1498 = vld [vmem:[#allocation13 + $0x130] sm:$0xff]
        %v1499 = vld [vmem:[#allocation13 + $0x138] sm:$0xff]
        %v1500 = vld [vmem:[#allocation13 + $0x140] sm:$0xff]
        %v1501 = vld [vmem:[#allocation13 + $0x148] sm:$0xff]
        %v1502 = vld [vmem:[#allocation13 + $0x150] sm:$0xff]
        %v1503 = vld [vmem:[#allocation13 + $0x158] sm:$0xff]
        %v1504 = vld [vmem:[#allocation13 + $0x160] sm:$0xff]
        %v1505 = vld [vmem:[#allocation13 + $0x168] sm:$0xff]
        %v1506 = vld [vmem:[#allocation13 + $0x170] sm:$0xff]
        %v1507 = vld [vmem:[#allocation13 + $0x178] sm:$0xff]
        %v1508 = vld [vmem:[#allocation13 + $0x180] sm:$0xff]
        %v1509 = vld [vmem:[#allocation13 + $0x188] sm:$0xff]
        %v1510 = vld [vmem:[#allocation13 + $0x190] sm:$0xff]
        %v1511 = vld [vmem:[#allocation13 + $0x198] sm:$0xff]
        %v1512 = vld [vmem:[#allocation13 + $0x1a0] sm:$0xff]
        %v1513 = vld [vmem:[#allocation13 + $0x1a8] sm:$0xff]
        %v1514 = vld [vmem:[#allocation13 + $0x1b0] sm:$0xff]
        %v1515 = vld [vmem:[#allocation13 + $0x1b8] sm:$0xff]
        %v1516 = vld [vmem:[#allocation13 + $0x1c0] sm:$0xff]
        %v1517 = vld [vmem:[#allocation13 + $0x1c8] sm:$0xff]
        %v1518 = vld [vmem:[#allocation13 + $0x1d0] sm:$0xff]
        %v1519 = vld [vmem:[#allocation13 + $0x1d8] sm:$0xff]
        %v1520 = vld [vmem:[#allocation13 + $0x1e0] sm:$0xff]
        %v1521 = vld [vmem:[#allocation13 + $0x1e8] sm:$0xff]
        %v1522 = vld [vmem:[#allocation13 + $0x1f0] sm:$0xff]
        %v1523 = vld [vmem:[#allocation13 + $0x1f8] sm:$0xff]
        %v1524 = vld [vmem:[#allocation15] sm:$0xff]
        %v1526 = vlaneseq
        %v1527 = vshrl.u32 %v1526, 7
        %v1528 = vsub.s32 0, %v1527
        %v1529 = vrot.slane %v1524, %v1528
        %v1530 = vlaneseq
        %v1531 = vshrl.u32 %v1530, 7
        %v1532 = vsub.s32 1, %v1531
        %v1533 = vrot.slane %v1524, %v1532
        %v1534 = vlaneseq
        %v1535 = vshrl.u32 %v1534, 7
        %v1536 = vsub.s32 2, %v1535
        %v1537 = vrot.slane %v1524, %v1536
        %v1538 = vlaneseq
        %v1539 = vshrl.u32 %v1538, 7
        %v1540 = vsub.s32 3, %v1539
        %v1541 = vrot.slane %v1524, %v1540
        %v1542 = vlaneseq
        %v1543 = vshrl.u32 %v1542, 7
        %v1544 = vsub.s32 4, %v1543
        %v1545 = vrot.slane %v1524, %v1544
        %v1546 = vlaneseq
        %v1547 = vshrl.u32 %v1546, 7
        %v1548 = vsub.s32 5, %v1547
        %v1549 = vrot.slane %v1524, %v1548
        %v1550 = vlaneseq
        %v1551 = vshrl.u32 %v1550, 7
        %v1552 = vsub.s32 6, %v1551
        %v1553 = vrot.slane %v1524, %v1552
        %v1554 = vlaneseq
        %v1555 = vshrl.u32 %v1554, 7
        %v1556 = vsub.s32 7, %v1555
        %v1557 = vrot.slane %v1524, %v1556
        %vm1566 = vcmask 523264
        %v1568 = vsel %vm1566, %v1456, 0
        %v1571 = vsel %vm1566, %v1457, 0
        %v1574 = vsel %vm1566, %v1458, 0
        %v1577 = vsel %vm1566, %v1459, 0
        %1579 = vmatprep.subr.mxu0 %v1461
        %1580 = vmatpush1.msra.mxu0 %v1460
        %1581 = vmatprep.subr.mxu0 %v1469
        %1582 = vmatpush1.msra.mxu0 %v1468
        %1583 = vmatprep.subr.mxu0 %v1477
        %1584 = vmatpush1.msra.mxu0 %v1476
        %1585 = vmatprep.subr.mxu0 %v1485
        %1586 = vmatpush1.msra.mxu0 %v1484
        %1587 = vmatprep.subr.mxu0 %v1493
        %1588 = vmatpush1.msra.mxu0 %v1492
        %1589 = vmatprep.subr.mxu0 %v1501
        %1590 = vmatpush1.msra.mxu0 %v1500
        %1591 = vmatprep.subr.mxu0 %v1509
        %1592 = vmatpush1.msra.mxu0 %v1508
        %1593 = vmatprep.subr.mxu0 %v1517
        %1594 = vmatpush1.msra.mxu0 %v1516
        %1595 = vmatprep.subr.mxu0 0.0
        %1596 = vmatpush1.msra.mxu0 0.0
        %1597 = vmatprep.subr.mxu0 0.0
        %1598 = vmatpush1.msra.mxu0 0.0
        %1599 = vmatprep.subr.mxu0 0.0
        %1600 = vmatpush1.msra.mxu0 0.0
        %1601 = vmatprep.subr.mxu0 0.0
        %1602 = vmatpush1.msra.mxu0 0.0
        %1603 = vmatprep.subr.mxu0 0.0
        %1604 = vmatpush1.msra.mxu0 0.0
        %1605 = vmatprep.subr.mxu0 0.0
        %1606 = vmatpush1.msra.mxu0 0.0
        %1607 = vmatprep.subr.mxu0 0.0
        %1608 = vmatpush1.msra.mxu0 0.0
        %1609 = vmatprep.subr.mxu0 0.0
        %1610 = vmatpush1.msra.mxu0 0.0
        %1611 = vmatprep.subr.mxu0 0.0
        %1612 = vmatpush1.msra.mxu0 0.0
        %1613 = vmatprep.subr.mxu0 0.0
        %1614 = vmatpush1.msra.mxu0 0.0
        %1615 = vmatprep.subr.mxu0 0.0
        %1616 = vmatpush1.msra.mxu0 0.0
        %1617 = vmatprep.subr.mxu0 0.0
        %1618 = vmatpush1.msra.mxu0 0.0
        %1619 = vmatprep.subr.mxu0 0.0
        %1620 = vmatpush1.msra.mxu0 0.0
        %1621 = vmatprep.subr.mxu0 0.0
        %1622 = vmatpush1.msra.mxu0 0.0
        %1623 = vmatprep.subr.mxu0 0.0
        %1624 = vmatpush1.msra.mxu0 0.0
        %1625 = vmatprep.subr.mxu0 0.0
        %1626 = vmatpush1.msra.mxu0 0.0
        %1627 = vmatprep.subr.mxu0 0.0
        %1628 = vmatpush1.msra.mxu0 0.0
        %1629 = vmatprep.subr.mxu0 0.0
        %1630 = vmatpush1.msra.mxu0 0.0
        %1631 = vmatprep.subr.mxu0 0.0
        %1632 = vmatpush1.msra.mxu0 0.0
        %1633 = vmatprep.subr.mxu0 0.0
        %1634 = vmatpush1.msra.mxu0 0.0
        %1635 = vmatprep.subr.mxu0 0.0
        %1636 = vmatpush1.msra.mxu0 0.0
        %1637 = vmatprep.subr.mxu0 0.0
        %1638 = vmatpush1.msra.mxu0 0.0
        %1639 = vmatprep.subr.mxu0 0.0
        %1640 = vmatpush1.msra.mxu0 0.0
        %1641 = vmatprep.subr.mxu0 0.0
        %1642 = vmatpush1.msra.mxu0 0.0
        %1643 = vmatprep.mubr.f32.mxu0 0.0
        %1644 = vmatmul.mubr.f32.gmra.mrb[0].mxu0 %v1568
        %v1645 = vpop.f32.mrb[0].mxu0
        %v1646 = vadd.f32 %v1529, %v1645
        %v1647 = vpop.f32.mrb[0].mxu0
        %v1648 = vadd.f32 %v1533, %v1647
        %1649 = vmatprep.mubr.f32.mxu0 0.0
        %1650 = vmatmul.mubr.f32.gmra.mrb[0].mxu0 %v1571
        %v1651 = vpop.f32.mrb[0].mxu0
        %v1652 = vadd.f32 %v1529, %v1651
        %v1653 = vpop.f32.mrb[0].mxu0
        %v1654 = vadd.f32 %v1533, %v1653
        %1655 = vmatprep.mubr.f32.mxu0 0.0
        %1656 = vmatmul.mubr.f32.gmra.mrb[0].mxu0 %v1574
        %v1657 = vpop.f32.mrb[0].mxu0
        %v1658 = vadd.f32 %v1529, %v1657
        %v1659 = vpop.f32.mrb[0].mxu0
        %v1660 = vadd.f32 %v1533, %v1659
        %1661 = vmatprep.mubr.f32.mxu0 0.0
        %1662 = vmatmul.mubr.f32.gmra.mrb[0].mxu0 %v1577
        %v1663 = vpop.f32.mrb[0].mxu0
        %v1664 = vadd.f32 %v1529, %v1663
        %v1665 = vpop.f32.mrb[0].mxu0
        %v1666 = vadd.f32 %v1533, %v1665
        %1667 = vdwg.mxu0
        %1668 = vmatprep.subr.mxu0 %v1463
        %1669 = vmatpush1.msra.mxu0 %v1462
        %1670 = vmatprep.subr.mxu0 %v1471
        %1671 = vmatpush1.msra.mxu0 %v1470
        %1672 = vmatprep.subr.mxu0 %v1479
        %1673 = vmatpush1.msra.mxu0 %v1478
        %1674 = vmatprep.subr.mxu0 %v1487
        %1675 = vmatpush1.msra.mxu0 %v1486
        %1676 = vmatprep.subr.mxu0 %v1495
        %1677 = vmatpush1.msra.mxu0 %v1494
        %1678 = vmatprep.subr.mxu0 %v1503
        %1679 = vmatpush1.msra.mxu0 %v1502
        %1680 = vmatprep.subr.mxu0 %v1511
        %1681 = vmatpush1.msra.mxu0 %v1510
        %1682 = vmatprep.subr.mxu0 %v1519
        %1683 = vmatpush1.msra.mxu0 %v1518
        %1684 = vmatprep.subr.mxu0 0.0
        %1685 = vmatpush1.msra.mxu0 0.0
        %1686 = vmatprep.subr.mxu0 0.0
        %1687 = vmatpush1.msra.mxu0 0.0
        %1688 = vmatprep.subr.mxu0 0.0
        %1689 = vmatpush1.msra.mxu0 0.0
        %1690 = vmatprep.subr.mxu0 0.0
        %1691 = vmatpush1.msra.mxu0 0.0
        %1692 = vmatprep.subr.mxu0 0.0
        %1693 = vmatpush1.msra.mxu0 0.0
        %1694 = vmatprep.subr.mxu0 0.0
        %1695 = vmatpush1.msra.mxu0 0.0
        %1696 = vmatprep.subr.mxu0 0.0
        %1697 = vmatpush1.msra.mxu0 0.0
        %1698 = vmatprep.subr.mxu0 0.0
        %1699 = vmatpush1.msra.mxu0 0.0
        %1700 = vmatprep.subr.mxu0 0.0
        %1701 = vmatpush1.msra.mxu0 0.0
        %1702 = vmatprep.subr.mxu0 0.0
        %1703 = vmatpush1.msra.mxu0 0.0
        %1704 = vmatprep.subr.mxu0 0.0
        %1705 = vmatpush1.msra.mxu0 0.0
        %1706 = vmatprep.subr.mxu0 0.0
        %1707 = vmatpush1.msra.mxu0 0.0
        %1708 = vmatprep.subr.mxu0 0.0
        %1709 = vmatpush1.msra.mxu0 0.0
        %1710 = vmatprep.subr.mxu0 0.0
        %1711 = vmatpush1.msra.mxu0 0.0
        %1712 = vmatprep.subr.mxu0 0.0
        %1713 = vmatpush1.msra.mxu0 0.0
        %1714 = vmatprep.subr.mxu0 0.0
        %1715 = vmatpush1.msra.mxu0 0.0
        %1716 = vmatprep.subr.mxu0 0.0
        %1717 = vmatpush1.msra.mxu0 0.0
        %1718 = vmatprep.subr.mxu0 0.0
        %1719 = vmatpush1.msra.mxu0 0.0
        %1720 = vmatprep.subr.mxu0 0.0
        %1721 = vmatpush1.msra.mxu0 0.0
        %1722 = vmatprep.subr.mxu0 0.0
        %1723 = vmatpush1.msra.mxu0 0.0
        %1724 = vmatprep.subr.mxu0 0.0
        %1725 = vmatpush1.msra.mxu0 0.0
        %1726 = vmatprep.subr.mxu0 0.0
        %1727 = vmatpush1.msra.mxu0 0.0
        %1728 = vmatprep.subr.mxu0 0.0
        %1729 = vmatpush1.msra.mxu0 0.0
        %1730 = vmatprep.subr.mxu0 0.0
        %1731 = vmatpush1.msra.mxu0 0.0
        %1732 = vmatprep.mubr.f32.mxu0 0.0
        %1733 = vmatmul.mubr.f32.gmra.mrb[0].mxu0 %v1568
        %v1734 = vpop.f32.mrb[0].mxu0
        %v1735 = vadd.f32 %v1537, %v1734
        %v1736 = vpop.f32.mrb[0].mxu0
        %v1737 = vadd.f32 %v1541, %v1736
        %1738 = vmatprep.mubr.f32.mxu0 0.0
        %1739 = vmatmul.mubr.f32.gmra.mrb[0].mxu0 %v1571
        %v1740 = vpop.f32.mrb[0].mxu0
        %v1741 = vadd.f32 %v1537, %v1740
        %v1742 = vpop.f32.mrb[0].mxu0
        %v1743 = vadd.f32 %v1541, %v1742
        %1744 = vmatprep.mubr.f32.mxu0 0.0
        %1745 = vmatmul.mubr.f32.gmra.mrb[0].mxu0 %v1574
        %v1746 = vpop.f32.mrb[0].mxu0
        %v1747 = vadd.f32 %v1537, %v1746
        %v1748 = vpop.f32.mrb[0].mxu0
        %v1749 = vadd.f32 %v1541, %v1748
        %1750 = vmatprep.mubr.f32.mxu0 0.0
        %1751 = vmatmul.mubr.f32.gmra.mrb[0].mxu0 %v1577
        %v1752 = vpop.f32.mrb[0].mxu0
        %v1753 = vadd.f32 %v1537, %v1752
        %v1754 = vpop.f32.mrb[0].mxu0
        %v1755 = vadd.f32 %v1541, %v1754
        %1756 = vdwg.mxu0
        %1757 = vmatprep.subr.mxu0 %v1465
        %1758 = vmatpush1.msra.mxu0 %v1464
        %1759 = vmatprep.subr.mxu0 %v1473
        %1760 = vmatpush1.msra.mxu0 %v1472
        %1761 = vmatprep.subr.mxu0 %v1481
        %1762 = vmatpush1.msra.mxu0 %v1480
        %1763 = vmatprep.subr.mxu0 %v1489
        %1764 = vmatpush1.msra.mxu0 %v1488
        %1765 = vmatprep.subr.mxu0 %v1497
        %1766 = vmatpush1.msra.mxu0 %v1496
        %1767 = vmatprep.subr.mxu0 %v1505
        %1768 = vmatpush1.msra.mxu0 %v1504
        %1769 = vmatprep.subr.mxu0 %v1513
        %1770 = vmatpush1.msra.mxu0 %v1512
        %1771 = vmatprep.subr.mxu0 %v1521
        %1772 = vmatpush1.msra.mxu0 %v1520
        %1773 = vmatprep.subr.mxu0 0.0
        %1774 = vmatpush1.msra.mxu0 0.0
        %1775 = vmatprep.subr.mxu0 0.0
        %1776 = vmatpush1.msra.mxu0 0.0
        %1777 = vmatprep.subr.mxu0 0.0
        %1778 = vmatpush1.msra.mxu0 0.0
        %1779 = vmatprep.subr.mxu0 0.0
        %1780 = vmatpush1.msra.mxu0 0.0
        %1781 = vmatprep.subr.mxu0 0.0
        %1782 = vmatpush1.msra.mxu0 0.0
        %1783 = vmatprep.subr.mxu0 0.0
        %1784 = vmatpush1.msra.mxu0 0.0
        %1785 = vmatprep.subr.mxu0 0.0
        %1786 = vmatpush1.msra.mxu0 0.0
        %1787 = vmatprep.subr.mxu0 0.0
        %1788 = vmatpush1.msra.mxu0 0.0
        %1789 = vmatprep.subr.mxu0 0.0
        %1790 = vmatpush1.msra.mxu0 0.0
        %1791 = vmatprep.subr.mxu0 0.0
        %1792 = vmatpush1.msra.mxu0 0.0
        %1793 = vmatprep.subr.mxu0 0.0
        %1794 = vmatpush1.msra.mxu0 0.0
        %1795 = vmatprep.subr.mxu0 0.0
        %1796 = vmatpush1.msra.mxu0 0.0
        %1797 = vmatprep.subr.mxu0 0.0
        %1798 = vmatpush1.msra.mxu0 0.0
        %1799 = vmatprep.subr.mxu0 0.0
        %1800 = vmatpush1.msra.mxu0 0.0
        %1801 = vmatprep.subr.mxu0 0.0
        %1802 = vmatpush1.msra.mxu0 0.0
        %1803 = vmatprep.subr.mxu0 0.0
        %1804 = vmatpush1.msra.mxu0 0.0
        %1805 = vmatprep.subr.mxu0 0.0
        %1806 = vmatpush1.msra.mxu0 0.0
        %1807 = vmatprep.subr.mxu0 0.0
        %1808 = vmatpush1.msra.mxu0 0.0
        %1809 = vmatprep.subr.mxu0 0.0
        %1810 = vmatpush1.msra.mxu0 0.0
        %1811 = vmatprep.subr.mxu0 0.0
        %1812 = vmatpush1.msra.mxu0 0.0
        %1813 = vmatprep.subr.mxu0 0.0
        %1814 = vmatpush1.msra.mxu0 0.0
        %1815 = vmatprep.subr.mxu0 0.0
        %1816 = vmatpush1.msra.mxu0 0.0
        %1817 = vmatprep.subr.mxu0 0.0
        %1818 = vmatpush1.msra.mxu0 0.0
        %1819 = vmatprep.subr.mxu0 0.0
        %1820 = vmatpush1.msra.mxu0 0.0
        %1821 = vmatprep.mubr.f32.mxu0 0.0
        %1822 = vmatmul.mubr.f32.gmra.mrb[0].mxu0 %v1568
        %v1823 = vpop.f32.mrb[0].mxu0
        %v1824 = vadd.f32 %v1545, %v1823
        %v1825 = vpop.f32.mrb[0].mxu0
        %v1826 = vadd.f32 %v1549, %v1825
        %1827 = vmatprep.mubr.f32.mxu0 0.0
        %1828 = vmatmul.mubr.f32.gmra.mrb[0].mxu0 %v1571
        %v1829 = vpop.f32.mrb[0].mxu0
        %v1830 = vadd.f32 %v1545, %v1829
        %v1831 = vpop.f32.mrb[0].mxu0
        %v1832 = vadd.f32 %v1549, %v1831
        %1833 = vmatprep.mubr.f32.mxu0 0.0
        %1834 = vmatmul.mubr.f32.gmra.mrb[0].mxu0 %v1574
        %v1835 = vpop.f32.mrb[0].mxu0
        %v1836 = vadd.f32 %v1545, %v1835
        %v1837 = vpop.f32.mrb[0].mxu0
        %v1838 = vadd.f32 %v1549, %v1837
        %1839 = vmatprep.mubr.f32.mxu0 0.0
        %1840 = vmatmul.mubr.f32.gmra.mrb[0].mxu0 %v1577
        %v1841 = vpop.f32.mrb[0].mxu0
        %v1842 = vadd.f32 %v1545, %v1841
        %v1843 = vpop.f32.mrb[0].mxu0
        %v1844 = vadd.f32 %v1549, %v1843
        %1845 = vdwg.mxu0
        %1846 = vmatprep.subr.mxu0 %v1467
        %1847 = vmatpush1.msra.mxu0 %v1466
        %1848 = vmatprep.subr.mxu0 %v1475
        %1849 = vmatpush1.msra.mxu0 %v1474
        %1850 = vmatprep.subr.mxu0 %v1483
        %1851 = vmatpush1.msra.mxu0 %v1482
        %1852 = vmatprep.subr.mxu0 %v1491
        %1853 = vmatpush1.msra.mxu0 %v1490
        %1854 = vmatprep.subr.mxu0 %v1499
        %1855 = vmatpush1.msra.mxu0 %v1498
        %1856 = vmatprep.subr.mxu0 %v1507
        %1857 = vmatpush1.msra.mxu0 %v1506
        %1858 = vmatprep.subr.mxu0 %v1515
        %1859 = vmatpush1.msra.mxu0 %v1514
        %1860 = vmatprep.subr.mxu0 %v1523
        %1861 = vmatpush1.msra.mxu0 %v1522
        %1862 = vmatprep.subr.mxu0 0.0
        %1863 = vmatpush1.msra.mxu0 0.0
        %1864 = vmatprep.subr.mxu0 0.0
        %1865 = vmatpush1.msra.mxu0 0.0
        %1866 = vmatprep.subr.mxu0 0.0
        %1867 = vmatpush1.msra.mxu0 0.0
        %1868 = vmatprep.subr.mxu0 0.0
        %1869 = vmatpush1.msra.mxu0 0.0
        %1870 = vmatprep.subr.mxu0 0.0
        %1871 = vmatpush1.msra.mxu0 0.0
        %1872 = vmatprep.subr.mxu0 0.0
        %1873 = vmatpush1.msra.mxu0 0.0
        %1874 = vmatprep.subr.mxu0 0.0
        %1875 = vmatpush1.msra.mxu0 0.0
        %1876 = vmatprep.subr.mxu0 0.0
        %1877 = vmatpush1.msra.mxu0 0.0
        %1878 = vmatprep.subr.mxu0 0.0
        %1879 = vmatpush1.msra.mxu0 0.0
        %1880 = vmatprep.subr.mxu0 0.0
        %1881 = vmatpush1.msra.mxu0 0.0
        %1882 = vmatprep.subr.mxu0 0.0
        %1883 = vmatpush1.msra.mxu0 0.0
        %1884 = vmatprep.subr.mxu0 0.0
        %1885 = vmatpush1.msra.mxu0 0.0
        %1886 = vmatprep.subr.mxu0 0.0
        %1887 = vmatpush1.msra.mxu0 0.0
        %1888 = vmatprep.subr.mxu0 0.0
        %1889 = vmatpush1.msra.mxu0 0.0
        %1890 = vmatprep.subr.mxu0 0.0
        %1891 = vmatpush1.msra.mxu0 0.0
        %1892 = vmatprep.subr.mxu0 0.0
        %1893 = vmatpush1.msra.mxu0 0.0
        %1894 = vmatprep.subr.mxu0 0.0
        %1895 = vmatpush1.msra.mxu0 0.0
        %1896 = vmatprep.subr.mxu0 0.0
        %1897 = vmatpush1.msra.mxu0 0.0
        %1898 = vmatprep.subr.mxu0 0.0
        %1899 = vmatpush1.msra.mxu0 0.0
        %1900 = vmatprep.subr.mxu0 0.0
        %1901 = vmatpush1.msra.mxu0 0.0
        %1902 = vmatprep.subr.mxu0 0.0
        %1903 = vmatpush1.msra.mxu0 0.0
        %1904 = vmatprep.subr.mxu0 0.0
        %1905 = vmatpush1.msra.mxu0 0.0
        %1906 = vmatprep.subr.mxu0 0.0
        %1907 = vmatpush1.msra.mxu0 0.0
        %1908 = vmatprep.subr.mxu0 0.0
        %1909 = vmatpush1.msra.mxu0 0.0
        %1910 = vmatprep.mubr.f32.mxu0 0.0
        %1911 = vmatmul.mubr.f32.gmra.mrb[0].mxu0 %v1568
        %v1912 = vpop.f32.mrb[0].mxu0
        %v1913 = vadd.f32 %v1553, %v1912
        %v1914 = vpop.f32.mrb[0].mxu0
        %v1915 = vadd.f32 %v1557, %v1914
        %1916 = vmatprep.mubr.f32.mxu0 0.0
        %1917 = vmatmul.mubr.f32.gmra.mrb[0].mxu0 %v1571
        %v1918 = vpop.f32.mrb[0].mxu0
        %v1919 = vadd.f32 %v1553, %v1918
        %v1920 = vpop.f32.mrb[0].mxu0
        %v1921 = vadd.f32 %v1557, %v1920
        %1922 = vmatprep.mubr.f32.mxu0 0.0
        %1923 = vmatmul.mubr.f32.gmra.mrb[0].mxu0 %v1574
        %v1924 = vpop.f32.mrb[0].mxu0
        %v1925 = vadd.f32 %v1553, %v1924
        %v1926 = vpop.f32.mrb[0].mxu0
        %v1927 = vadd.f32 %v1557, %v1926
        %1928 = vmatprep.mubr.f32.mxu0 0.0
        %1929 = vmatmul.mubr.f32.gmra.mrb[0].mxu0 %v1577
        %v1930 = vpop.f32.mrb[0].mxu0
        %v1931 = vadd.f32 %v1553, %v1930
        %v1932 = vpop.f32.mrb[0].mxu0
        %v1933 = vadd.f32 %v1557, %v1932
        %1934 = vdwg.mxu0
        %1935 = vst [vmem:[%s564] sm:$0x3f] %v1646
        %vm1936 = vcmask 259072
        %1937 = vst.msk [vmem:[%s564 + $0x8] sm:$0x3f] %vm1936, %v1648
        %1938 = vst [vmem:[%s564 + $0x10] sm:$0x3f] %v1652
        %1939 = vst.msk [vmem:[%s564 + $0x18] sm:$0x3f] %vm1936, %v1654
        %1940 = vst [vmem:[%s564 + $0x20] sm:$0x3f] %v1658
        %1941 = vst.msk [vmem:[%s564 + $0x28] sm:$0x3f] %vm1936, %v1660
        %1942 = vst [vmem:[%s564 + $0x30] sm:$0x3f] %v1664
        %1943 = vst.msk [vmem:[%s564 + $0x38] sm:$0x3f] %vm1936, %v1666
        %1948 = vrot.lane.b32.xlu0 %v1648, 96
        %v1949 = vpop.permute.xlu0 %1948
        %1950 = vrot.lane.b32.xlu0 %v1654, 96
        %v1951 = vpop.permute.xlu0 %1950
        %1952 = vrot.lane.b32.xlu0 %v1660, 96
        %v1953 = vpop.permute.xlu0 %1952
        %1954 = vrot.lane.b32.xlu0 %v1666, 96
        %v1955 = vpop.permute.xlu0 %1954
        %vm1960 = vcmask 5120
        %1961 = vst.msk [vmem:[%s577] sm:$0x3f] %vm1960, %v1949
        %1962 = vst.msk [vmem:[%s577 + $0x8] sm:$0x3f] %vm1960, %v1951
        %1963 = vst.msk [vmem:[%s577 + $0x10] sm:$0x3f] %vm1960, %v1953
        %1964 = vst.msk [vmem:[%s577 + $0x18] sm:$0x3f] %vm1960, %v1955
        %v1965 = vlaneseq
        %v1966 = vand.u32 %v1965, 127
        %v1967 = vadd.s32 %v1966, 128
        %v1968 = vadd.s32 %v1966, 256
        %vm1969 = vcmp.lt.s32.totalorder %v1966, 0
        %v1970 = vsub.s32 0, %v1966
        %v1971 = vsel %vm1969, %v1970, %v1966
        %v1972 = vshrl.u32 %v1971, 2
        %v1973 = vand.u32 %v1971, 3
        %v1974 = vsub.s32 0, %v1973
        %v1975 = vsel %vm1969, %v1974, %v1973
        %vm1976 = vcmp.lt.s32.totalorder %v1967, 0
        %v1977 = vsub.s32 0, %v1967
        %v1978 = vsel %vm1976, %v1977, %v1967
        %v1979 = vshrl.u32 %v1978, 2
        %v1980 = vand.u32 %v1978, 3
        %v1981 = vsub.s32 0, %v1980
        %v1982 = vsel %vm1976, %v1981, %v1980
        %vm1983 = vcmp.lt.s32.totalorder %v1968, 0
        %v1984 = vsub.s32 0, %v1968
        %v1985 = vsel %vm1983, %v1984, %v1968
        %v1986 = vshrl.u32 %v1985, 2
        %v1987 = vand.u32 %v1985, 3
        %v1988 = vsub.s32 0, %v1987
        %v1989 = vsel %vm1983, %v1988, %v1987
        %vm1990 = vcmp.ne.s32.totalorder %v1975, 0
        %vm1991 = vcmp.ne.s32.totalorder %v1982, 0
        %vm1992 = vcmp.ne.s32.totalorder %v1989, 0
        %vm1993 = vcmp.lt.s32.totalorder %v1975, 0
        %vm1994 = vcmp.lt.s32.totalorder %v1982, 0
        %vm1995 = vcmp.lt.s32.totalorder %v1989, 0
        %vm1996 = vmand %vm1993, %vm1990
        %vm1997 = vmand %vm1994, %vm1991
        %vm1998 = vmand %vm1995, %vm1992
        %v1999 = vadd.s32 %v1975, 4
        %v2000 = vadd.s32 %v1982, 4
        %v2001 = vadd.s32 %v1989, 4
        %v2002 = vsel %vm1996, %v1999, %v1975
        %v2003 = vsel %vm1997, %v2000, %v1982
        %v2004 = vsel %vm1998, %v2001, %v1989
        %vm2005 = vcmp.eq.s32.totalorder %v2002, 1
        %vm2006 = vcmp.eq.s32.totalorder %v2003, 1
        %vm2007 = vcmp.eq.s32.totalorder %v2004, 1
        %vm2008 = vcmp.eq.s32.totalorder %v2002, 2
        %vm2009 = vcmp.eq.s32.totalorder %v2003, 2
        %vm2010 = vcmp.eq.s32.totalorder %v2004, 2
        %vm2011 = vmor %vm2005, %vm2008
        %vm2012 = vmor %vm2006, %vm2009
        %vm2013 = vmor %vm2007, %vm2010
        %v2014 = vsel %vm2011, -0.5, 0.5
        %v2015 = vsel %vm2012, -0.5, 0.5
        %v2016 = vsel %vm2013, -0.5, 0.5
        %v2017 = vmul.f32 %v1735, 1.442695
        %v2018 = vpow.pop %v2017
        %v2019 = vmul.f32 %v1737, 1.442695
        %v2020 = vpow.pop %v2019
        %v2021 = vmul.f32 %v1824, 1.442695
        %v2022 = vpow.pop %v2021
        %v2023 = vmul.f32 %v1741, 1.442695
        %v2024 = vpow.pop %v2023
        %v2025 = vmul.f32 %v1743, 1.442695
        %v2026 = vpow.pop %v2025
        %v2027 = vmul.f32 %v1830, 1.442695
        %v2028 = vpow.pop %v2027
        %v2029 = vmul.f32 %v1747, 1.442695
        %v2030 = vpow.pop %v2029
        %v2031 = vmul.f32 %v1749, 1.442695
        %v2032 = vpow.pop %v2031
        %v2033 = vmul.f32 %v1836, 1.442695
        %v2034 = vpow.pop %v2033
        %v2035 = vmul.f32 %v1753, 1.442695
        %v2036 = vpow.pop %v2035
        %v2037 = vmul.f32 %v1755, 1.442695
        %v2038 = vpow.pop %v2037
        %v2039 = vmul.f32 %v1842, 1.442695
        %v2040 = vpow.pop %v2039
        %v2041 = vmul.f32 %v2018, 0.5
        %v2042 = vmul.f32 %v2020, 0.5
        %v2043 = vmul.f32 %v2022, 0.5
        %v2044 = vmul.f32 %v2024, 0.5
        %v2045 = vmul.f32 %v2026, 0.5
        %v2046 = vmul.f32 %v2028, 0.5
        %v2047 = vmul.f32 %v2030, 0.5
        %v2048 = vmul.f32 %v2032, 0.5
        %v2049 = vmul.f32 %v2034, 0.5
        %v2050 = vmul.f32 %v2036, 0.5
        %v2051 = vmul.f32 %v2038, 0.5
        %v2052 = vmul.f32 %v2040, 0.5
        %v2053 = vmul.f32 %v1826, 1.442695
        %v2054 = vpow.pop %v2053
        %v2055 = vmul.f32 %v1913, 1.442695
        %v2056 = vpow.pop %v2055
        %v2057 = vmul.f32 %v1915, 1.442695
        %v2058 = vpow.pop %v2057
        %v2059 = vmul.f32 %v1832, 1.442695
        %v2060 = vpow.pop %v2059
        %v2061 = vmul.f32 %v1919, 1.442695
        %v2062 = vpow.pop %v2061
        %v2063 = vmul.f32 %v1921, 1.442695
        %v2064 = vpow.pop %v2063
        %v2065 = vmul.f32 %v1838, 1.442695
        %v2066 = vpow.pop %v2065
        %v2067 = vmul.f32 %v1925, 1.442695
        %v2068 = vpow.pop %v2067
        %v2069 = vmul.f32 %v1927, 1.442695
        %v2070 = vpow.pop %v2069
        %v2071 = vmul.f32 %v1844, 1.442695
        %v2072 = vpow.pop %v2071
        %v2073 = vmul.f32 %v1931, 1.442695
        %v2074 = vpow.pop %v2073
        %v2075 = vmul.f32 %v1933, 1.442695
        %v2076 = vpow.pop %v2075
        %v2077 = vmul.f32 %v2014, %v2054
        %v2078 = vmul.f32 %v2015, %v2056
        %v2079 = vmul.f32 %v2016, %v2058
        %v2080 = vmul.f32 %v2014, %v2060
        %v2081 = vmul.f32 %v2015, %v2062
        %v2082 = vmul.f32 %v2016, %v2064
        %v2083 = vmul.f32 %v2014, %v2066
        %v2084 = vmul.f32 %v2015, %v2068
        %v2085 = vmul.f32 %v2016, %v2070
        %v2086 = vmul.f32 %v2014, %v2072
        %v2087 = vmul.f32 %v2015, %v2074
        %v2088 = vmul.f32 %v2016, %v2076
        %v2089 = vadd.f32 %v2041, %v2077
        %v2090 = vadd.f32 %v2042, %v2078
        %v2091 = vadd.f32 %v2043, %v2079
        %v2092 = vadd.f32 %v2044, %v2080
        %v2093 = vadd.f32 %v2045, %v2081
        %v2094 = vadd.f32 %v2046, %v2082
        %v2095 = vadd.f32 %v2047, %v2083
        %v2096 = vadd.f32 %v2048, %v2084
        %v2097 = vadd.f32 %v2049, %v2085
        %v2098 = vadd.f32 %v2050, %v2086
        %v2099 = vadd.f32 %v2051, %v2087
        %v2100 = vadd.f32 %v2052, %v2088
        %2101 = vst [vmem:[%s571] sm:$0x3f] %v2089
        %2102 = vst [vmem:[%s571 + $0x8] sm:$0x3f] %v2090
        %vm2103 = vcmask 521216
        %2104 = vst.msk [vmem:[%s571 + $0x10] sm:$0x3f] %vm2103, %v2091
        %2105 = vst [vmem:[%s571 + $0x18] sm:$0x3f] %v2092
        %2106 = vst [vmem:[%s571 + $0x20] sm:$0x3f] %v2093
        %2107 = vst.msk [vmem:[%s571 + $0x28] sm:$0x3f] %vm2103, %v2094
        %2108 = vst [vmem:[%s571 + $0x30] sm:$0x3f] %v2095
        %2109 = vst [vmem:[%s571 + $0x38] sm:$0x3f] %v2096
        %2110 = vst.msk [vmem:[%s571 + $0x40] sm:$0x3f] %vm2103, %v2097
        %2111 = vst [vmem:[%s571 + $0x48] sm:$0x3f] %v2098
        %2112 = vst [vmem:[%s571 + $0x50] sm:$0x3f] %v2099
        %2113 = vst.msk [vmem:[%s571 + $0x58] sm:$0x3f] %vm2103, %v2100
        %s2114 = smul.u32 4, %s31
        %p2115 = scmp.lt.s32.totalorder %s2114, 7
        %s2116 = scalar_select %p2115, %s2114, 7
        %s2117 = smul.addr %s2116, 2
        %s2118 = smul.addr %s2117, 8
        %s2119 = scalar_lea.vmem %s10, %s2118
        %s2120 = smul.u32 4, %s31
        %p2121 = scmp.lt.s32.totalorder %s2120, 7
        %s2122 = scalar_select %p2121, %s2120, 7
        %s2123 = smul.addr %s2122, 3
        %s2124 = smul.addr %s2123, 8
        %s2125 = scalar_lea.vmem %s11, %s2124
        %s2126 = smul.u32 4, %s31
        %p2127 = scmp.lt.s32.totalorder %s2126, 7
        %s2128 = scalar_select %p2127, %s2126, 7
        %s2129 = smul.addr %s2128, 8
        %s2130 = scalar_lea.vmem %s12, %s2129
        // Predicated region
        $region97: #{mcg_decoder_forward.1} parent=59 // pred_check
          %p2131 = pneg %p264
        $region98: #{mcg_decoder_forward.1} parent=59 // pred_check_branch
          %2133 = sbr.rel (%p2131) target = $region100
        $region99: #{mcg_decoder_forward.1} parent=59 // pred_region
          %s2134 = smul.u32 4, %s31
        $region100: #{mcg_decoder_forward.1} parent=59 // pred_fallthru
          _
        // Predicated region
        $region101: #{mcg_decoder_forward.1} parent=59 // pred_check
          %p2135 = pneg %p290
        $region102: #{mcg_decoder_forward.1} parent=59 // pred_check_branch
          %2137 = sbr.rel (%p2135) target = $region104
        $region103: #{mcg_decoder_forward.1} parent=59 // pred_region
          %s2138 = smul.u32 4, %s31
        $region104: #{mcg_decoder_forward.1} parent=59 // pred_fallthru
          _
        // Predicated region
        $region105: #{mcg_decoder_forward.1} parent=59 // pred_check
          %p2139 = pneg %p316
        $region106: #{mcg_decoder_forward.1} parent=59 // pred_check_branch
          %2141 = sbr.rel (%p2139) target = $region108
        $region107: #{mcg_decoder_forward.1} parent=59 // pred_region
          %s2142 = smul.u32 4, %s31
        $region108: #{mcg_decoder_forward.1} parent=59 // pred_fallthru
          _
      $region60: #{mcg_decoder_forward.1} parent=5 // pred_fallthru
        _
      %p2143 = scmp.le.s32.totalorder 2, %s26
      // Predicated region
      $region109: #{mcg_decoder_forward.1} parent=5 // pred_check
        %p2144 = pneg %p2143
      $region110: #{mcg_decoder_forward.1} parent=5 // pred_check_branch
        %2146 = sbr.rel (%p2144) target = $region112
      $region111: #{mcg_decoder_forward.1} parent=5 // pred_region
        %s2147 = ssub.s32 %s26, 2
        // Predicated region
        $region113: #{mcg_decoder_forward.1} parent=111 // pred_check
          %p2148 = pneg %p270
        $region114: #{mcg_decoder_forward.1} parent=111 // pred_check_branch
          %2150 = sbr.rel (%p2148) target = $region116
        $region115: #{mcg_decoder_forward.1} parent=111 // pred_region
          %s2151 = smul.u32 4, %s32
          %p2152 = scmp.lt.s32.totalorder %s2151, 7
          %s2153 = scalar_select %p2152, %s2151, 7
          %s2154 = smul.addr %s2153, 2
          %s2155 = smul.addr %s2154, 8
          %s2156 = scalar_lea.vmem %s10, %s2155
        $region116: #{mcg_decoder_forward.1} parent=111 // pred_fallthru
          _
        // Predicated region
        $region117: #{mcg_decoder_forward.1} parent=111 // pred_check
          %p2157 = pneg %p296
        $region118: #{mcg_decoder_forward.1} parent=111 // pred_check_branch
          %2159 = sbr.rel (%p2157) target = $region120
        $region119: #{mcg_decoder_forward.1} parent=111 // pred_region
          %s2160 = smul.u32 4, %s32
          %p2161 = scmp.lt.s32.totalorder %s2160, 7
          %s2162 = scalar_select %p2161, %s2160, 7
          %s2163 = smul.addr %s2162, 3
          %s2164 = smul.addr %s2163, 8
          %s2165 = scalar_lea.vmem %s11, %s2164
        $region120: #{mcg_decoder_forward.1} parent=111 // pred_fallthru
          _
        // Predicated region
        $region121: #{mcg_decoder_forward.1} parent=111 // pred_check
          %p2166 = pneg %p322
        $region122: #{mcg_decoder_forward.1} parent=111 // pred_check_branch
          %2168 = sbr.rel (%p2166) target = $region124
        $region123: #{mcg_decoder_forward.1} parent=111 // pred_region
          %s2169 = smul.u32 4, %s32
          %p2170 = scmp.lt.s32.totalorder %s2169, 7
          %s2171 = scalar_select %p2170, %s2169, 7
          %s2172 = smul.addr %s2171, 8
          %s2173 = scalar_lea.vmem %s12, %s2172
        $region124: #{mcg_decoder_forward.1} parent=111 // pred_fallthru
          _
      $region112: #{mcg_decoder_forward.1} parent=5 // pred_fallthru
        _
    $region6: #{mcg_decoder_forward.1} parent=1 // loop_footer
      %s30 = sadd.s32 1, %s26
    $region7: #{mcg_decoder_forward.1} parent=1 // loop_footer_branch
      %25 = sbr.rel target = $region3
    $region8: #{mcg_decoder_forward.1} parent=1 // loop_exit
      _
    %2174 = vsyncpa [#allocation3], 1
    %s2175 = scalar_lea.sflag [#allocation3], 1
    %2176 = vsyncpa %s2175, 1
    %2177 = vsyncpa [#allocation5], 1
    %2178 = vsyncpa [#allocation8], 1
    %2179 = vsyncpa [#allocation11], 1
    %2180 = vsyncpa [#allocation14], 1

</llo_original>
